<compile_context>
chip_gen: v6e
topology: v6e:2x2x1
jax: 0.10.0
libtpu: 0.0.40
codegen_flags: <defaults>
</compile_context>

<pallas_src>
import jax
import jax.numpy as jnp
from jax import lax
from jax.experimental import pallas as pl
from jax.experimental.pallas import tpu as pltpu


def bert_embedding_kernel(seq_ref, tok_ref, pos_ref, out_ref):
    """One grid step: embed `rows = block_b * S` tokens as a dense tile.

    seq_ref: VMEM (rows, 1) int32 -- token ids of this batch block
    tok_ref: VMEM (V, D) f32      -- token embedding table (row 0 = padding row)
    pos_ref: VMEM (S, D) f32      -- positional embedding table
    out_ref: VMEM (rows, D) f32   -- token + positional embeddings
    """
    rows = seq_ref.shape[0]
    num_vocab = tok_ref.shape[0]
    seq_len = pos_ref.shape[0]

    ids = seq_ref[...]                                                # (rows, 1)
    vocab_iota = lax.broadcasted_iota(jnp.int32, (rows, num_vocab), 1)
    onehot = (vocab_iota == ids).astype(tok_ref.dtype)                # (rows, V)

    # Row gather as a one-hot matmul on the MXU (exact for 0/1 weights at HIGHEST).
    emb = jnp.dot(
        onehot,
        tok_ref[...],
        preferred_element_type=jnp.float32,
        precision=jax.lax.Precision.HIGHEST,
    )                                                                 # (rows, D)

    pos = pos_ref[...]                                                # (S, D)
    reps = rows // seq_len
    if reps > 1:  # static: broadcast positions across the batch rows of the block
        pos = jnp.tile(pos, (reps, 1))

    out_ref[...] = (emb + pos).astype(out_ref.dtype)
    # TODO(synk): training-mode dropout (prng mask + 1/(1-p) scale) not emulated;
    # nn.Dropout(p=0.1) is identity in eval mode.


def _build_call(total_rows, rows, num_vocab, seq_len, d_model, dtype,
                single_buffer_tables):
    num_blocks = total_rows // rows

    if single_buffer_tables:
        # Constant-index tables: single-buffered so they are not doubled in VMEM.
        tok_spec = pl.BlockSpec((num_vocab, d_model), lambda i: (0, 0),
                                pipeline_mode=pl.Buffered(1))
        pos_spec = pl.BlockSpec((seq_len, d_model), lambda i: (0, 0),
                                pipeline_mode=pl.Buffered(1))
    else:
        tok_spec = pl.BlockSpec((num_vocab, d_model), lambda i: (0, 0))
        pos_spec = pl.BlockSpec((seq_len, d_model), lambda i: (0, 0))

    itemsize = jnp.dtype(dtype).itemsize
    tables = (num_vocab + seq_len) * d_model * itemsize
    blocks = 2 * rows * (d_model * itemsize + 4) + rows * num_vocab * itemsize
    vmem_limit = int(min(max(2 * (tables + blocks), 16 * 1024 * 1024),
                         48 * 1024 * 1024))

    return pl.pallas_call(
        bert_embedding_kernel,
        out_shape=jax.ShapeDtypeStruct((total_rows, d_model), dtype),
        grid=(num_blocks,),
        in_specs=[
            pl.BlockSpec((rows, 1), lambda i: (i, 0)),   # token ids for block i
            tok_spec,
            pos_spec,
        ],
        out_specs=pl.BlockSpec((rows, d_model), lambda i: (i, 0)),
        compiler_params=pltpu.CompilerParams(
            dimension_semantics=("parallel",),
            vmem_limit_bytes=vmem_limit,
        ),
    )


def bert_embedding(seq, tok_w, pos_w, *, block_b=None):
    """seq: (B, S) int; tok_w: (V, D) f32; pos_w: (S, D) f32 -> (B, S, D) f32."""
    batch, seq_len = seq.shape
    num_vocab, d_model = tok_w.shape
    assert pos_w.shape == (seq_len, d_model)
    # TODO(synk): for realistic vocabularies (V*D*4 beyond the VMEM budget) the
    # token table should stay in HBM (memory_space=pl.ANY) with a per-block DMA
    # row gather instead of being VMEM-resident.

    if block_b is None:
        # A few hundred sublane rows per grid step, but keep >= 2 steps when the
        # batch allows it so both v7x TensorCores get work.
        target_rows = 512
        block_b = max(1, min(batch // 2 if batch >= 2 else batch,
                             max(1, target_rows // seq_len)))
        while batch % block_b != 0:
            block_b -= 1
    if batch % block_b != 0 or (block_b * seq_len) % 8 != 0:
        block_b = batch  # single full block: always layout-legal

    rows = block_b * seq_len
    total_rows = batch * seq_len
    seq2d = seq.reshape(total_rows, 1).astype(jnp.int32)

    args = (total_rows, rows, num_vocab, seq_len, d_model, tok_w.dtype)
    try:
        call = _build_call(*args, single_buffer_tables=True)
        out2d = jax.block_until_ready(call(seq2d, tok_w, pos_w))
    except Exception:
        # Fallback for Pallas versions that reject single-buffered pipeline_mode;
        # default double-buffering is still correct (just a bit more VMEM).
        call = _build_call(*args, single_buffer_tables=False)
        out2d = call(seq2d, tok_w, pos_w)

    return out2d.reshape(batch, seq_len, d_model)


if __name__ == "__main__":
    # Small shapes consistent with the module: vocab=32, embed=128, max_len=seq=8, batch=2.
    VOCAB, EMBED, MAX_LEN, BATCH = 32, 128, 8, 2

    key = jax.random.PRNGKey(0)
    k_tok, k_pos, k_seq = jax.random.split(key, 3)

    # nn.Embedding default init ~ N(0, 1); padding_idx=0 row is zeroed.
    tok_w = jax.random.normal(k_tok, (VOCAB, EMBED), dtype=jnp.float32)
    tok_w = tok_w.at[0].set(0.0)
    pos_w = jax.random.normal(k_pos, (MAX_LEN, EMBED), dtype=jnp.float32)

    seq = jax.random.randint(k_seq, (BATCH, MAX_LEN), 0, VOCAB, dtype=jnp.int32)

    out = bert_embedding(seq, tok_w, pos_w)
    out = jax.block_until_ready(out)

    # Reference (plain JAX) check of the forward semantics.
    ref = tok_w[seq] + pos_w[None, :, :]
    assert out.shape == (BATCH, MAX_LEN, EMBED)
    assert jnp.allclose(out, ref, atol=1e-5), "mismatch vs reference"

    print("KERNEL_OK")
</pallas_src>

<mosaic_0001>
module attributes {stable_mosaic.version = 11 : i64} {
  func.func @bert_embedding_kernel(%arg0: i32, %arg1: memref<8x1xi32, #tpu.memory_space<vmem>>, %arg2: memref<32x128xf32, #tpu.memory_space<vmem>>, %arg3: memref<8x128xf32, #tpu.memory_space<vmem>>, %arg4: memref<8x128xf32, #tpu.memory_space<vmem>>) attributes {dimension_semantics = [#tpu.dimension_semantics<parallel>], iteration_bounds = array<i64: 2>, scalar_prefetch = 0 : i64, scratch_operands = 0 : i64, tpu.core_type = #tpu.core_type<tc>, window_params = [{transform_indices = @transform_0, window_bounds = array<i64: 8, 1>}, {pipeline_mode = #tpu.pipeline_mode<synchronous>, transform_indices = @transform_1, window_bounds = array<i64: 32, 128>}, {pipeline_mode = #tpu.pipeline_mode<synchronous>, transform_indices = @transform_2, window_bounds = array<i64: 8, 128>}, {transform_indices = @transform_3, window_bounds = array<i64: 8, 128>}]} {
    %c0 = arith.constant 0 : index
    %c0_0 = arith.constant 0 : index
    %0 = vector.load %arg1[%c0, %c0_0] : memref<8x1xi32, #tpu.memory_space<vmem>>, vector<8x1xi32>
    %1 = tpu.iota {dimensions = array<i32: 1>} : vector<8x32xi32>
    %2 = vector.broadcast %0 : vector<8x1xi32> to vector<8x32xi32>
    %3 = arith.cmpi eq, %1, %2 : vector<8x32xi32>
    %4 = arith.extui %3 : vector<8x32xi1> to vector<8x32xi32>
    %5 = arith.sitofp %4 : vector<8x32xi32> to vector<8x32xf32>
    %c0_1 = arith.constant 0 : index
    %c0_2 = arith.constant 0 : index
    %6 = vector.load %arg2[%c0_1, %c0_2] : memref<32x128xf32, #tpu.memory_space<vmem>>, vector<32x128xf32>
    %cst = arith.constant dense<0.000000e+00> : vector<8x128xf32>
    %7 = tpu.matmul %5, %6, %cst {dimension_numbers = #tpu.dot_dimension_numbers<[1], [0], [0], [1], [0, 0, 1, 1], [], []>, precision = #tpu.contract_precision<fp32>} : vector<8x32xf32>, vector<32x128xf32>, vector<8x128xf32> -> vector<8x128xf32>
    %c0_3 = arith.constant 0 : index
    %c0_4 = arith.constant 0 : index
    %8 = vector.load %arg3[%c0_3, %c0_4] : memref<8x128xf32, #tpu.memory_space<vmem>>, vector<8x128xf32>
    %9 = arith.addf %7, %8 : vector<8x128xf32>
    %c0_5 = arith.constant 0 : index
    %c0_6 = arith.constant 0 : index
    %10 = vector.load %arg4[%c0_5, %c0_6] : memref<8x128xf32, #tpu.memory_space<vmem>>, vector<8x128xf32>
    tpu.vector_store %arg4[%c0_5, %c0_6], %9 {strides = array<i32>} : memref<8x128xf32, #tpu.memory_space<vmem>>, vector<8x128xf32>,
    return
  }
  func.func @transform_0(%arg0: i32) -> (i32, i32) {
    %c0_i32 = arith.constant 0 : i32
    %c0_i32_0 = arith.constant 0 : i32
    return %arg0, %c0_i32 : i32, i32
  }
  func.func @transform_1(%arg0: i32) -> (i32, i32) {
    %c0_i32 = arith.constant 0 : i32
    %c0_i32_0 = arith.constant 0 : i32
    %c0_i32_1 = arith.constant 0 : i32
    return %c0_i32, %c0_i32_0 : i32, i32
  }
  func.func @transform_2(%arg0: i32) -> (i32, i32) {
    %c0_i32 = arith.constant 0 : i32
    %c0_i32_0 = arith.constant 0 : i32
    %c0_i32_1 = arith.constant 0 : i32
    return %c0_i32, %c0_i32_0 : i32, i32
  }
  func.func @transform_3(%arg0: i32) -> (i32, i32) {
    %c0_i32 = arith.constant 0 : i32
    %c0_i32_0 = arith.constant 0 : i32
    return %arg0, %c0_i32 : i32, i32
  }
}

module attributes {stable_mosaic.version = 11 : i64} {
  func.func @bert_embedding_kernel(%arg0: i32, %arg1: memref<8x1xi32, #tpu.memory_space<vmem>>, %arg2: memref<32x128xf32, #tpu.memory_space<vmem>>, %arg3: memref<8x128xf32, #tpu.memory_space<vmem>>, %arg4: memref<8x128xf32, #tpu.memory_space<vmem>>) attributes {dimension_semantics = [#tpu.dimension_semantics<parallel>], iteration_bounds = array<i64: 2>, scalar_prefetch = 0 : i64, scratch_operands = 0 : i64, tpu.core_type = #tpu.core_type<tc>, window_params = [{transform_indices = @transform_0, window_bounds = array<i64: 8, 1>}, {pipeline_mode = #tpu.pipeline_mode<synchronous>, transform_indices = @transform_1, window_bounds = array<i64: 32, 128>}, {pipeline_mode = #tpu.pipeline_mode<synchronous>, transform_indices = @transform_2, window_bounds = array<i64: 8, 128>}, {transform_indices = @transform_3, window_bounds = array<i64: 8, 128>}]} {
    %c0 = arith.constant 0 : index
    %c0_0 = arith.constant 0 : index
    %0 = vector.load %arg1[%c0, %c0_0] : memref<8x1xi32, #tpu.memory_space<vmem>>, vector<8x1xi32>
    %1 = tpu.iota {dimensions = array<i32: 1>} : vector<8x32xi32>
    %2 = vector.broadcast %0 : vector<8x1xi32> to vector<8x32xi32>
    %3 = arith.cmpi eq, %1, %2 : vector<8x32xi32>
    %4 = arith.extui %3 : vector<8x32xi1> to vector<8x32xi32>
    %5 = arith.sitofp %4 : vector<8x32xi32> to vector<8x32xf32>
    %c0_1 = arith.constant 0 : index
    %c0_2 = arith.constant 0 : index
    %6 = vector.load %arg2[%c0_1, %c0_2] : memref<32x128xf32, #tpu.memory_space<vmem>>, vector<32x128xf32>
    %cst = arith.constant dense<0.000000e+00> : vector<8x128xf32>
    %7 = tpu.matmul %5, %6, %cst {dimension_numbers = #tpu.dot_dimension_numbers<[1], [0], [0], [1], [0, 0, 1, 1], [], []>, precision = #tpu.contract_precision<fp32>} : vector<8x32xf32>, vector<32x128xf32>, vector<8x128xf32> -> vector<8x128xf32>
    %c0_3 = arith.constant 0 : index
    %c0_4 = arith.constant 0 : index
    %8 = vector.load %arg3[%c0_3, %c0_4] : memref<8x128xf32, #tpu.memory_space<vmem>>, vector<8x128xf32>
    %9 = arith.addf %7, %8 : vector<8x128xf32>
    %c0_5 = arith.constant 0 : index
    %c0_6 = arith.constant 0 : index
    %10 = vector.load %arg4[%c0_5, %c0_6] : memref<8x128xf32, #tpu.memory_space<vmem>>, vector<8x128xf32>
    tpu.vector_store %arg4[%c0_5, %c0_6], %9 {strides = array<i32>} : memref<8x128xf32, #tpu.memory_space<vmem>>, vector<8x128xf32>,
    return
  }
  func.func @transform_0(%arg0: i32) -> (i32, i32) {
    %c0_i32 = arith.constant 0 : i32
    %c0_i32_0 = arith.constant 0 : i32
    return %arg0, %c0_i32 : i32, i32
  }
  func.func @transform_1(%arg0: i32) -> (i32, i32) {
    %c0_i32 = arith.constant 0 : i32
    %c0_i32_0 = arith.constant 0 : i32
    %c0_i32_1 = arith.constant 0 : i32
    return %c0_i32, %c0_i32_0 : i32, i32
  }
  func.func @transform_2(%arg0: i32) -> (i32, i32) {
    %c0_i32 = arith.constant 0 : i32
    %c0_i32_0 = arith.constant 0 : i32
    %c0_i32_1 = arith.constant 0 : i32
    return %c0_i32, %c0_i32_0 : i32, i32
  }
  func.func @transform_3(%arg0: i32) -> (i32, i32) {
    %c0_i32 = arith.constant 0 : i32
    %c0_i32_0 = arith.constant 0 : i32
    return %arg0, %c0_i32 : i32, i32
  }
}

</mosaic_0001>

<llo_original>
// kernel: tpu_custom_call.1
$region0: #{tpu_custom_call.1}
  #allocation0 [shape = 'u32[]', space=smem, size = 0x4, offset = 0x4, fixed_abs, tag = 'smem constant byte address 0x4 - core index']
  #allocation1 [shape = 'u32[144,128]{1,0:T(1,128)}', space=vmem, size = 0x12000, scoped, tag = 'internal scratch']
  %s0 = inlined_call_operand.vmem [shape: s32[16,1], index: 0, kind: input, shape index: {}]
  %s1 = inlined_call_operand.hbm [shape: f32[32,128], index: 1, kind: input, shape index: {}]
  %s2 = inlined_call_operand.vmem [shape: f32[8,128], index: 2, kind: input, shape index: {}]
  %s3 = inlined_call_operand.hbm [shape: f32[16,128], index: 3, kind: output, shape index: {}]
  %s4 = sld [smem:[#allocation0]]
  $region49: #{tpu_custom_call.1} parent=0
    _
  %s6 = ssub.s32 1, %s4
  %s7 = scalar_select 0, %s6, %s4
  $region1: #{tpu_custom_call.1} parent=0
    #allocation2 [shape = 'u8[16384]{0}', space=vmem, size = 0x4000, scoped, tag = 'input window, operand 1, single buffered']
    #allocation3 [shape = 's32[2]{0}', space=sflag, size = 0x8, scoped, tag = 'scoped memory for tpu_custom_call.1']
    #allocation4 [shape = 's32[2]{0}', space=sflag, size = 0x8, scoped, tag = 'scoped memory for tpu_custom_call.1']
    #allocation5 [shape = 'u8[8192]{0}', space=vmem, size = 0x2000, scoped, tag = 'output window, operand 0']
    %8 = vsyncpa [#allocation3], 0
    %9 = vsyncpa [#allocation4], 0
    %s10 = scalar_lea.sflag [#allocation4], 1
    %11 = vsyncpa %s10, 0
    loop: start=0, step=1, limit=4
    $region2: #{tpu_custom_call.1} parent=1 // loop_pre_header
      _
    $region3: #{tpu_custom_call.1} parent=1 // loop_header
      %s13 = sphi 0, %s17
      %p14 = scmp.ge.s32.totalorder %s13, 4
      %s23 = sphi 0, %s25
      %s26 = sphi 0, %s23
      %s27 = sphi 0, %s26
      %s43 = sphi 0, %s27
      %s47 = sphi 0, %s47
      %s49 = sphi 0, %s47
      %s50 = sphi 0, %s49
      %s64 = sphi 0, %s50
      %s68 = sphi 0, %s68
      %s70 = sphi 0, %s68
      %s71 = sphi 0, %s70
      %s85 = sphi 0, %s71
      %s91 = sphi 0, %s93
      %s94 = sphi 0, %s91
      %s95 = sphi 0, %s94
      %s111 = sphi 0, %s95
    $region4: #{tpu_custom_call.1} parent=1 // loop_header_branch
      %16 = sbr.rel (%p14) target = $region8
    $region5: #{tpu_custom_call.1} parent=1 // loop_body
      %s18 = ssub.s32 %s13, 1
      %s19 = ssub.s32 %s13, 2
      %s20 = sadd.s32 %s13, 1
      %s21 = ssub.s32 %s13, %s20
      %p22 = scmp.eq.s32.totalorder %s21, 0
      %s24 = sadd.s32 %s23, 1
      %s25 = scalar_select %p22, %s23, %s24
      %p28 = pneg %p22
      %p29 = scmp.eq.s32.totalorder %s13, 1
      %p30 = por %p28, %p29
      %p31 = scmp.ne.s32.totalorder %s23, %s26
      %p32 = scmp.eq.s32.totalorder %s13, 0
      %p33 = por %p31, %p32
      %p34 = scmp.ne.s32.totalorder %s23, %s26
      %p35 = scmp.eq.s32.totalorder %s18, 1
      %p36 = por %p34, %p35
      %p37 = scmp.ne.s32.totalorder %s26, %s27
      %p38 = scmp.eq.s32.totalorder %s18, 0
      %p39 = por %p37, %p38
      %p40 = scmp.ne.s32.totalorder %s26, %s27
      %p41 = scmp.eq.s32.totalorder %s19, 1
      %p42 = por %p40, %p41
      %p44 = scmp.ne.s32.totalorder %s27, %s43
      %p45 = scmp.eq.s32.totalorder %s19, 0
      %p46 = por %p44, %p45
      %s48 = sadd.s32 %s47, 1
      %p51 = scmp.eq.s32.totalorder %s13, 1
      %p52 = scmp.ne.s32.totalorder %s47, %s49
      %p53 = scmp.eq.s32.totalorder %s13, 0
      %p54 = por %p52, %p53
      %p55 = scmp.ne.s32.totalorder %s47, %s49
      %p56 = scmp.eq.s32.totalorder %s18, 1
      %p57 = por %p55, %p56
      %p58 = scmp.ne.s32.totalorder %s49, %s50
      %p59 = scmp.eq.s32.totalorder %s18, 0
      %p60 = por %p58, %p59
      %p61 = scmp.ne.s32.totalorder %s49, %s50
      %p62 = scmp.eq.s32.totalorder %s19, 1
      %p63 = por %p61, %p62
      %p65 = scmp.ne.s32.totalorder %s50, %s64
      %p66 = scmp.eq.s32.totalorder %s19, 0
      %p67 = por %p65, %p66
      %s69 = sadd.s32 %s68, 1
      %p72 = scmp.eq.s32.totalorder %s13, 1
      %p73 = scmp.ne.s32.totalorder %s68, %s70
      %p74 = scmp.eq.s32.totalorder %s13, 0
      %p75 = por %p73, %p74
      %p76 = scmp.ne.s32.totalorder %s68, %s70
      %p77 = scmp.eq.s32.totalorder %s18, 1
      %p78 = por %p76, %p77
      %p79 = scmp.ne.s32.totalorder %s70, %s71
      %p80 = scmp.eq.s32.totalorder %s18, 0
      %p81 = por %p79, %p80
      %p82 = scmp.ne.s32.totalorder %s70, %s71
      %p83 = scmp.eq.s32.totalorder %s19, 1
      %p84 = por %p82, %p83
      %p86 = scmp.ne.s32.totalorder %s71, %s85
      %p87 = scmp.eq.s32.totalorder %s19, 0
      %p88 = por %p86, %p87
      %s89 = ssub.s32 %s13, %s20
      %p90 = scmp.eq.s32.totalorder %s89, 0
      %s92 = sadd.s32 %s91, 1
      %s93 = scalar_select %p90, %s91, %s92
      %p96 = pneg %p90
      %p97 = scmp.eq.s32.totalorder %s13, 1
      %p98 = por %p96, %p97
      %p99 = scmp.ne.s32.totalorder %s91, %s94
      %p100 = scmp.eq.s32.totalorder %s13, 0
      %p101 = por %p99, %p100
      %p102 = scmp.ne.s32.totalorder %s91, %s94
      %p103 = scmp.eq.s32.totalorder %s18, 1
      %p104 = por %p102, %p103
      %p105 = scmp.ne.s32.totalorder %s94, %s95
      %p106 = scmp.eq.s32.totalorder %s18, 0
      %p107 = por %p105, %p106
      %p108 = scmp.ne.s32.totalorder %s94, %s95
      %p109 = scmp.eq.s32.totalorder %s19, 1
      %p110 = por %p108, %p109
      %p112 = scmp.ne.s32.totalorder %s95, %s111
      %p113 = scmp.eq.s32.totalorder %s19, 0
      %p114 = por %p112, %p113
      %p115 = scmp.le.s32.totalorder 1, %s13
      %p116 = scmp.lt.s32.totalorder %s13, 3
      %p117 = pnand %p115, %p116
      %p118 = pneg %p117
      // Predicated region
      $region9: #{tpu_custom_call.1} parent=5 // pred_check
        _
      $region10: #{tpu_custom_call.1} parent=5 // pred_check_branch
        %120 = sbr.rel (%p117) target = $region12
      $region11: #{tpu_custom_call.1} parent=5 // pred_region
        %s121 = ssub.s32 %s13, 1
        // Predicated region
        $region13: #{tpu_custom_call.1} parent=11 // pred_check
          %p122 = pneg %p60
        $region14: #{tpu_custom_call.1} parent=11 // pred_check_branch
          %124 = sbr.rel (%p122) target = $region16
        $region15: #{tpu_custom_call.1} parent=11 // pred_region
          %s126 = ssub.s32 512, 512
          %127 = vsyncadd [#allocation3], %s126
          %s128 = sshll.u32 [#allocation2], 4
          %s129 = int_to_ptr.vmem [resolvable:$true] %s128
          %134 = dma.hbm_to_vmem [thread:$0]  %s1, 512, %s129, [#allocation3], 128, 128, 8
        $region16: #{tpu_custom_call.1} parent=11 // pred_fallthru
          _
        // Predicated region
        $region17: #{tpu_custom_call.1} parent=11 // pred_check
          %p135 = pneg %p81
        $region18: #{tpu_custom_call.1} parent=11 // pred_check_branch
          %137 = sbr.rel (%p135) target = $region20
        $region19: #{tpu_custom_call.1} parent=11 // pred_region
          _
        $region20: #{tpu_custom_call.1} parent=11 // pred_fallthru
          _
      $region12: #{tpu_custom_call.1} parent=5 // pred_fallthru
        _
      %p138 = scmp.lt.s32.totalorder %s13, 2
      // Predicated region
      $region21: #{tpu_custom_call.1} parent=5 // pred_check
        %p139 = pneg %p138
      $region22: #{tpu_custom_call.1} parent=5 // pred_check_branch
        %141 = sbr.rel (%p139) target = $region24
      $region23: #{tpu_custom_call.1} parent=5 // pred_region
        // Predicated region
        $region25: #{tpu_custom_call.1} parent=23 // pred_check
          %p142 = pneg %p33
        $region26: #{tpu_custom_call.1} parent=23 // pred_check_branch
          %144 = sbr.rel (%p142) target = $region28
        $region27: #{tpu_custom_call.1} parent=23 // pred_region
          %p145 = scmp.lt.s32.totalorder %s13, 1
          %s146 = scalar_select %p145, %s13, 1
          %s147 = smul.addr %s146, 8
          %s148 = scalar_lea.vmem %s0, %s147
        $region28: #{tpu_custom_call.1} parent=23 // pred_fallthru
          _
      $region24: #{tpu_custom_call.1} parent=5 // pred_fallthru
        _
      %p149 = scmp.le.s32.totalorder 1, %s13
      %p150 = scmp.lt.s32.totalorder %s13, 3
      %p151 = pnand %p149, %p150
      %p152 = pneg %p151
      // Predicated region
      $region29: #{tpu_custom_call.1} parent=5 // pred_check
        _
      $region30: #{tpu_custom_call.1} parent=5 // pred_check_branch
        %154 = sbr.rel (%p151) target = $region32
      $region31: #{tpu_custom_call.1} parent=5 // pred_region
        %s155 = ssub.s32 %s13, 1
        // Predicated region
        $region33: #{tpu_custom_call.1} parent=31 // pred_check
          %p156 = pneg %p60
        $region34: #{tpu_custom_call.1} parent=31 // pred_check_branch
          %158 = sbr.rel (%p156) target = $region36
        $region35: #{tpu_custom_call.1} parent=31 // pred_region
          %159 = dma.done [#allocation3], 512
        $region36: #{tpu_custom_call.1} parent=31 // pred_fallthru
          _
        %p160 = scmp.lt.s32.totalorder %s18, 1
        %s161 = scalar_select %p160, %s18, 1
        %s162 = smul.addr %s161, 8
        %s163 = scalar_lea.vmem %s0, %s162
        %p164 = pneg %p39
        %p165 = pneg %p36
        %p166 = pneg %p60
        %p167 = pneg %p57
        %p168 = pneg %p81
        %p169 = pneg %p78
        %p170 = pneg %p107
        %p171 = pneg %p104
        %s172 = sand.u32 %s94, 1
        %s173 = scalar_lea.sflag [#allocation4], %s172
        %s174 = sand.u32 %s94, 1
        %s175 = smul.addr %s174, 8
        %s176 = scalar_lea.vmem [#allocation5], %s175
        %p177 = scmp.lt.s32.totalorder %s18, 1
        %s178 = scalar_select %p177, %s18, 1
        %s179 = smul.addr %s178, 8
        %s180 = scalar_lea.vmem %s0, %s179
        %v181 = vld [vmem:[%s180] sm:$0xff]
        %v182 = vlaneseq
        %v183 = vand.u32 %v182, 127
        %184 = vset.pattern.permute.xlu0 0
        %185 = vperm.xlu0 %184, %v181
        %v186 = vpop.permute.xlu0 %185
        %vm187 = vcmp.eq.s32.totalorder %v183, %v186
        %v188 = vsel %vm187, 1, 0
        %v189 = vcvt.s32.f32 %v188
        %v190 = vld [vmem:[#allocation2] sm:$0xff]
        %v191 = vld [vmem:[#allocation2 + $0x8] sm:$0xff]
        %v192 = vld [vmem:[#allocation2 + $0x10] sm:$0xff]
        %v193 = vld [vmem:[#allocation2 + $0x18] sm:$0xff]
        %v194 = vld [vmem:[%s2] sm:$0xff]
        %vm195 = vcmask 261120
        %v197 = vsel %vm195, %v189, 0
        %199 = vmatprep.subr.mxu0 0.0
        %200 = vmatpush1.msra.mxu0 0.0
        %201 = vmatprep.subr.mxu0 0.0
        %202 = vmatpush1.msra.mxu0 0.0
        %203 = vmatprep.subr.mxu0 0.0
        %204 = vmatpush1.msra.mxu0 0.0
        %205 = vmatprep.subr.mxu0 0.0
        %206 = vmatpush1.msra.mxu0 0.0
        %207 = vmatprep.subr.mxu0 0.0
        %208 = vmatpush1.msra.mxu0 0.0
        %209 = vmatprep.subr.mxu0 0.0
        %210 = vmatpush1.msra.mxu0 0.0
        %211 = vmatprep.subr.mxu0 0.0
        %212 = vmatpush1.msra.mxu0 0.0
        %213 = vmatprep.subr.mxu0 0.0
        %214 = vmatpush1.msra.mxu0 0.0
        %215 = vmatprep.subr.mxu0 0.0
        %216 = vmatpush1.msra.mxu0 0.0
        %217 = vmatprep.subr.mxu0 0.0
        %218 = vmatpush1.msra.mxu0 0.0
        %219 = vmatprep.subr.mxu0 0.0
        %220 = vmatpush1.msra.mxu0 0.0
        %221 = vmatprep.subr.mxu0 0.0
        %222 = vmatpush1.msra.mxu0 0.0
        %223 = vmatprep.subr.mxu0 0.0
        %v224 = vand.u32 %v193, 4294901760
        %225 = vmatpush1.msra.mxu0 %v224
        %226 = vmatprep.subr.mxu0 0.0
        %v227 = vand.u32 %v192, 4294901760
        %228 = vmatpush1.msra.mxu0 %v227
        %229 = vmatprep.subr.mxu0 0.0
        %v230 = vand.u32 %v191, 4294901760
        %231 = vmatpush1.msra.mxu0 %v230
        %232 = vmatprep.subr.mxu0 0.0
        %v233 = vand.u32 %v190, 4294901760
        %234 = vmatpush1.msra.mxu0 %v233
        %235 = vmatprep.subr.mxu0 0.0
        %236 = vmatpush2.msra.mxu0 0.0
        %237 = vmatprep.subr.mxu0 0.0
        %238 = vmatpush2.msra.mxu0 0.0
        %239 = vmatprep.subr.mxu0 0.0
        %240 = vmatpush2.msra.mxu0 0.0
        %241 = vmatprep.subr.mxu0 0.0
        %242 = vmatpush2.msra.mxu0 0.0
        %243 = vmatprep.subr.mxu0 0.0
        %244 = vmatpush2.msra.mxu0 0.0
        %245 = vmatprep.subr.mxu0 0.0
        %246 = vmatpush2.msra.mxu0 0.0
        %247 = vmatprep.subr.mxu0 0.0
        %248 = vmatpush2.msra.mxu0 0.0
        %249 = vmatprep.subr.mxu0 0.0
        %250 = vmatpush2.msra.mxu0 0.0
        %251 = vmatprep.subr.mxu0 0.0
        %252 = vmatpush2.msra.mxu0 0.0
        %253 = vmatprep.subr.mxu0 0.0
        %254 = vmatpush2.msra.mxu0 0.0
        %255 = vmatprep.subr.mxu0 0.0
        %256 = vmatpush2.msra.mxu0 0.0
        %257 = vmatprep.subr.mxu0 0.0
        %258 = vmatpush2.msra.mxu0 0.0
        %259 = vmatprep.subr.mxu0 0.0
        %260 = vmatpush2.msra.mxu0 0.0
        %261 = vmatprep.subr.mxu0 0.0
        %262 = vmatpush2.msra.mxu0 0.0
        %263 = vmatprep.subr.mxu0 0.0
        %264 = vmatpush2.msra.mxu0 0.0
        %265 = vmatprep.subr.mxu0 0.0
        %266 = vmatpush2.msra.mxu0 0.0
        %267 = vmatprep.mubr.f32.mxu0 0.0
        %v268 = vand.u32 %v197, 4294901760
        %v269 = vsub.f32 %v197, %v268
        %v270 = vand.u32 %v269, 4294901760
        %v271 = vsub.f32 %v269, %v270
        %v272 = vand.u32 %v271, 4294901760
        %273 = vmatmul.mubr.f32.gmra.mxu0 %v272
        %v274 = vpop.f32.mrf.mxu0
        %v275 = vadd.f32 %v194, %v274
        %v276 = vpop.f32.mrf.mxu0
        %277 = vdwg.mxu0
        %278 = vmatprep.subr.mxu0 0.0
        %279 = vmatpush1.msra.mxu0 0.0
        %280 = vmatprep.subr.mxu0 0.0
        %281 = vmatpush1.msra.mxu0 0.0
        %282 = vmatprep.subr.mxu0 0.0
        %283 = vmatpush1.msra.mxu0 0.0
        %284 = vmatprep.subr.mxu0 0.0
        %285 = vmatpush1.msra.mxu0 0.0
        %286 = vmatprep.subr.mxu0 0.0
        %287 = vmatpush1.msra.mxu0 0.0
        %288 = vmatprep.subr.mxu0 0.0
        %289 = vmatpush1.msra.mxu0 0.0
        %290 = vmatprep.subr.mxu0 0.0
        %291 = vmatpush1.msra.mxu0 0.0
        %292 = vmatprep.subr.mxu0 0.0
        %293 = vmatpush1.msra.mxu0 0.0
        %294 = vmatprep.subr.mxu0 0.0
        %295 = vmatpush1.msra.mxu0 0.0
        %296 = vmatprep.subr.mxu0 0.0
        %297 = vmatpush1.msra.mxu0 0.0
        %298 = vmatprep.subr.mxu0 0.0
        %299 = vmatpush1.msra.mxu0 0.0
        %300 = vmatprep.subr.mxu0 0.0
        %301 = vmatpush1.msra.mxu0 0.0
        %302 = vmatprep.subr.mxu0 0.0
        %v303 = vand.u32 %v193, 4294901760
        %v304 = vsub.f32 %v193, %v303
        %v305 = vand.u32 %v304, 4294901760
        %v306 = vsub.f32 %v304, %v305
        %v307 = vand.u32 %v306, 4294901760
        %308 = vmatpush1.msra.mxu0 %v307
        %309 = vmatprep.subr.mxu0 0.0
        %v310 = vand.u32 %v192, 4294901760
        %v311 = vsub.f32 %v192, %v310
        %v312 = vand.u32 %v311, 4294901760
        %v313 = vsub.f32 %v311, %v312
        %v314 = vand.u32 %v313, 4294901760
        %315 = vmatpush1.msra.mxu0 %v314
        %316 = vmatprep.subr.mxu0 0.0
        %v317 = vand.u32 %v191, 4294901760
        %v318 = vsub.f32 %v191, %v317
        %v319 = vand.u32 %v318, 4294901760
        %v320 = vsub.f32 %v318, %v319
        %v321 = vand.u32 %v320, 4294901760
        %322 = vmatpush1.msra.mxu0 %v321
        %323 = vmatprep.subr.mxu0 0.0
        %v324 = vand.u32 %v190, 4294901760
        %v325 = vsub.f32 %v190, %v324
        %v326 = vand.u32 %v325, 4294901760
        %v327 = vsub.f32 %v325, %v326
        %v328 = vand.u32 %v327, 4294901760
        %329 = vmatpush1.msra.mxu0 %v328
        %330 = vmatprep.subr.mxu0 0.0
        %331 = vmatpush2.msra.mxu0 0.0
        %332 = vmatprep.subr.mxu0 0.0
        %333 = vmatpush2.msra.mxu0 0.0
        %334 = vmatprep.subr.mxu0 0.0
        %335 = vmatpush2.msra.mxu0 0.0
        %336 = vmatprep.subr.mxu0 0.0
        %337 = vmatpush2.msra.mxu0 0.0
        %338 = vmatprep.subr.mxu0 0.0
        %339 = vmatpush2.msra.mxu0 0.0
        %340 = vmatprep.subr.mxu0 0.0
        %341 = vmatpush2.msra.mxu0 0.0
        %342 = vmatprep.subr.mxu0 0.0
        %343 = vmatpush2.msra.mxu0 0.0
        %344 = vmatprep.subr.mxu0 0.0
        %345 = vmatpush2.msra.mxu0 0.0
        %346 = vmatprep.subr.mxu0 0.0
        %347 = vmatpush2.msra.mxu0 0.0
        %348 = vmatprep.subr.mxu0 0.0
        %349 = vmatpush2.msra.mxu0 0.0
        %350 = vmatprep.subr.mxu0 0.0
        %351 = vmatpush2.msra.mxu0 0.0
        %352 = vmatprep.subr.mxu0 0.0
        %353 = vmatpush2.msra.mxu0 0.0
        %354 = vmatprep.subr.mxu0 0.0
        %355 = vmatpush2.msra.mxu0 0.0
        %356 = vmatprep.subr.mxu0 0.0
        %357 = vmatpush2.msra.mxu0 0.0
        %358 = vmatprep.subr.mxu0 0.0
        %359 = vmatpush2.msra.mxu0 0.0
        %360 = vmatprep.subr.mxu0 0.0
        %361 = vmatpush2.msra.mxu0 0.0
        %362 = vmatprep.mubr.f32.mxu0 0.0
        %v363 = vand.u32 %v197, 4294901760
        %364 = vmatmul.mubr.f32.gmra.mxu0 %v363
        %v365 = vpop.f32.mrf.mxu0
        %v366 = vadd.f32 %v275, %v365
        %v367 = vpop.f32.mrf.mxu0
        %368 = vdwg.mxu0
        %369 = vmatprep.subr.mxu0 0.0
        %370 = vmatpush1.msra.mxu0 0.0
        %371 = vmatprep.subr.mxu0 0.0
        %372 = vmatpush1.msra.mxu0 0.0
        %373 = vmatprep.subr.mxu0 0.0
        %374 = vmatpush1.msra.mxu0 0.0
        %375 = vmatprep.subr.mxu0 0.0
        %376 = vmatpush1.msra.mxu0 0.0
        %377 = vmatprep.subr.mxu0 0.0
        %378 = vmatpush1.msra.mxu0 0.0
        %379 = vmatprep.subr.mxu0 0.0
        %380 = vmatpush1.msra.mxu0 0.0
        %381 = vmatprep.subr.mxu0 0.0
        %382 = vmatpush1.msra.mxu0 0.0
        %383 = vmatprep.subr.mxu0 0.0
        %384 = vmatpush1.msra.mxu0 0.0
        %385 = vmatprep.subr.mxu0 0.0
        %386 = vmatpush1.msra.mxu0 0.0
        %387 = vmatprep.subr.mxu0 0.0
        %388 = vmatpush1.msra.mxu0 0.0
        %389 = vmatprep.subr.mxu0 0.0
        %390 = vmatpush1.msra.mxu0 0.0
        %391 = vmatprep.subr.mxu0 0.0
        %392 = vmatpush1.msra.mxu0 0.0
        %393 = vmatprep.subr.mxu0 0.0
        %v394 = vand.u32 %v193, 4294901760
        %v395 = vsub.f32 %v193, %v394
        %396 = vmatpush1.msra.mxu0 %v395
        %397 = vmatprep.subr.mxu0 0.0
        %v398 = vand.u32 %v192, 4294901760
        %v399 = vsub.f32 %v192, %v398
        %400 = vmatpush1.msra.mxu0 %v399
        %401 = vmatprep.subr.mxu0 0.0
        %v402 = vand.u32 %v191, 4294901760
        %v403 = vsub.f32 %v191, %v402
        %404 = vmatpush1.msra.mxu0 %v403
        %405 = vmatprep.subr.mxu0 0.0
        %v406 = vand.u32 %v190, 4294901760
        %v407 = vsub.f32 %v190, %v406
        %408 = vmatpush1.msra.mxu0 %v407
        %409 = vmatprep.subr.mxu0 0.0
        %410 = vmatpush2.msra.mxu0 0.0
        %411 = vmatprep.subr.mxu0 0.0
        %412 = vmatpush2.msra.mxu0 0.0
        %413 = vmatprep.subr.mxu0 0.0
        %414 = vmatpush2.msra.mxu0 0.0
        %415 = vmatprep.subr.mxu0 0.0
        %416 = vmatpush2.msra.mxu0 0.0
        %417 = vmatprep.subr.mxu0 0.0
        %418 = vmatpush2.msra.mxu0 0.0
        %419 = vmatprep.subr.mxu0 0.0
        %420 = vmatpush2.msra.mxu0 0.0
        %421 = vmatprep.subr.mxu0 0.0
        %422 = vmatpush2.msra.mxu0 0.0
        %423 = vmatprep.subr.mxu0 0.0
        %424 = vmatpush2.msra.mxu0 0.0
        %425 = vmatprep.subr.mxu0 0.0
        %426 = vmatpush2.msra.mxu0 0.0
        %427 = vmatprep.subr.mxu0 0.0
        %428 = vmatpush2.msra.mxu0 0.0
        %429 = vmatprep.subr.mxu0 0.0
        %430 = vmatpush2.msra.mxu0 0.0
        %431 = vmatprep.subr.mxu0 0.0
        %432 = vmatpush2.msra.mxu0 0.0
        %433 = vmatprep.subr.mxu0 0.0
        %434 = vmatpush2.msra.mxu0 0.0
        %435 = vmatprep.subr.mxu0 0.0
        %436 = vmatpush2.msra.mxu0 0.0
        %437 = vmatprep.subr.mxu0 0.0
        %438 = vmatpush2.msra.mxu0 0.0
        %439 = vmatprep.subr.mxu0 0.0
        %440 = vmatpush2.msra.mxu0 0.0
        %441 = vmatprep.mubr.f32.mxu0 0.0
        %v442 = vand.u32 %v197, 4294901760
        %v443 = vsub.f32 %v197, %v442
        %444 = vmatmul.mubr.f32.gmra.mxu0 %v443
        %v445 = vpop.f32.mrf.mxu0
        %v446 = vadd.f32 %v366, %v445
        %v447 = vpop.f32.mrf.mxu0
        %448 = vdwg.mxu0
        %449 = vmatprep.subr.mxu0 0.0
        %450 = vmatpush1.msra.mxu0 0.0
        %451 = vmatprep.subr.mxu0 0.0
        %452 = vmatpush1.msra.mxu0 0.0
        %453 = vmatprep.subr.mxu0 0.0
        %454 = vmatpush1.msra.mxu0 0.0
        %455 = vmatprep.subr.mxu0 0.0
        %456 = vmatpush1.msra.mxu0 0.0
        %457 = vmatprep.subr.mxu0 0.0
        %458 = vmatpush1.msra.mxu0 0.0
        %459 = vmatprep.subr.mxu0 0.0
        %460 = vmatpush1.msra.mxu0 0.0
        %461 = vmatprep.subr.mxu0 0.0
        %462 = vmatpush1.msra.mxu0 0.0
        %463 = vmatprep.subr.mxu0 0.0
        %464 = vmatpush1.msra.mxu0 0.0
        %465 = vmatprep.subr.mxu0 0.0
        %466 = vmatpush1.msra.mxu0 0.0
        %467 = vmatprep.subr.mxu0 0.0
        %468 = vmatpush1.msra.mxu0 0.0
        %469 = vmatprep.subr.mxu0 0.0
        %470 = vmatpush1.msra.mxu0 0.0
        %471 = vmatprep.subr.mxu0 0.0
        %472 = vmatpush1.msra.mxu0 0.0
        %473 = vmatprep.subr.mxu0 0.0
        %v474 = vand.u32 %v193, 4294901760
        %475 = vmatpush1.msra.mxu0 %v474
        %476 = vmatprep.subr.mxu0 0.0
        %v477 = vand.u32 %v192, 4294901760
        %478 = vmatpush1.msra.mxu0 %v477
        %479 = vmatprep.subr.mxu0 0.0
        %v480 = vand.u32 %v191, 4294901760
        %481 = vmatpush1.msra.mxu0 %v480
        %482 = vmatprep.subr.mxu0 0.0
        %v483 = vand.u32 %v190, 4294901760
        %484 = vmatpush1.msra.mxu0 %v483
        %485 = vmatprep.subr.mxu0 0.0
        %486 = vmatpush2.msra.mxu0 0.0
        %487 = vmatprep.subr.mxu0 0.0
        %488 = vmatpush2.msra.mxu0 0.0
        %489 = vmatprep.subr.mxu0 0.0
        %490 = vmatpush2.msra.mxu0 0.0
        %491 = vmatprep.subr.mxu0 0.0
        %492 = vmatpush2.msra.mxu0 0.0
        %493 = vmatprep.subr.mxu0 0.0
        %494 = vmatpush2.msra.mxu0 0.0
        %495 = vmatprep.subr.mxu0 0.0
        %496 = vmatpush2.msra.mxu0 0.0
        %497 = vmatprep.subr.mxu0 0.0
        %498 = vmatpush2.msra.mxu0 0.0
        %499 = vmatprep.subr.mxu0 0.0
        %500 = vmatpush2.msra.mxu0 0.0
        %501 = vmatprep.subr.mxu0 0.0
        %502 = vmatpush2.msra.mxu0 0.0
        %503 = vmatprep.subr.mxu0 0.0
        %504 = vmatpush2.msra.mxu0 0.0
        %505 = vmatprep.subr.mxu0 0.0
        %506 = vmatpush2.msra.mxu0 0.0
        %507 = vmatprep.subr.mxu0 0.0
        %508 = vmatpush2.msra.mxu0 0.0
        %509 = vmatprep.subr.mxu0 0.0
        %510 = vmatpush2.msra.mxu0 0.0
        %511 = vmatprep.subr.mxu0 0.0
        %512 = vmatpush2.msra.mxu0 0.0
        %513 = vmatprep.subr.mxu0 0.0
        %514 = vmatpush2.msra.mxu0 0.0
        %515 = vmatprep.subr.mxu0 0.0
        %516 = vmatpush2.msra.mxu0 0.0
        %517 = vmatprep.mubr.f32.mxu0 0.0
        %v518 = vand.u32 %v197, 4294901760
        %v519 = vsub.f32 %v197, %v518
        %v520 = vand.u32 %v519, 4294901760
        %521 = vmatmul.mubr.f32.gmra.mxu0 %v520
        %v522 = vpop.f32.mrf.mxu0
        %v523 = vadd.f32 %v446, %v522
        %v524 = vpop.f32.mrf.mxu0
        %525 = vdwg.mxu0
        %526 = vmatprep.subr.mxu0 0.0
        %527 = vmatpush1.msra.mxu0 0.0
        %528 = vmatprep.subr.mxu0 0.0
        %529 = vmatpush1.msra.mxu0 0.0
        %530 = vmatprep.subr.mxu0 0.0
        %531 = vmatpush1.msra.mxu0 0.0
        %532 = vmatprep.subr.mxu0 0.0
        %533 = vmatpush1.msra.mxu0 0.0
        %534 = vmatprep.subr.mxu0 0.0
        %535 = vmatpush1.msra.mxu0 0.0
        %536 = vmatprep.subr.mxu0 0.0
        %537 = vmatpush1.msra.mxu0 0.0
        %538 = vmatprep.subr.mxu0 0.0
        %539 = vmatpush1.msra.mxu0 0.0
        %540 = vmatprep.subr.mxu0 0.0
        %541 = vmatpush1.msra.mxu0 0.0
        %542 = vmatprep.subr.mxu0 0.0
        %543 = vmatpush1.msra.mxu0 0.0
        %544 = vmatprep.subr.mxu0 0.0
        %545 = vmatpush1.msra.mxu0 0.0
        %546 = vmatprep.subr.mxu0 0.0
        %547 = vmatpush1.msra.mxu0 0.0
        %548 = vmatprep.subr.mxu0 0.0
        %549 = vmatpush1.msra.mxu0 0.0
        %550 = vmatprep.subr.mxu0 0.0
        %v551 = vand.u32 %v193, 4294901760
        %v552 = vsub.f32 %v193, %v551
        %v553 = vand.u32 %v552, 4294901760
        %554 = vmatpush1.msra.mxu0 %v553
        %555 = vmatprep.subr.mxu0 0.0
        %v556 = vand.u32 %v192, 4294901760
        %v557 = vsub.f32 %v192, %v556
        %v558 = vand.u32 %v557, 4294901760
        %559 = vmatpush1.msra.mxu0 %v558
        %560 = vmatprep.subr.mxu0 0.0
        %v561 = vand.u32 %v191, 4294901760
        %v562 = vsub.f32 %v191, %v561
        %v563 = vand.u32 %v562, 4294901760
        %564 = vmatpush1.msra.mxu0 %v563
        %565 = vmatprep.subr.mxu0 0.0
        %v566 = vand.u32 %v190, 4294901760
        %v567 = vsub.f32 %v190, %v566
        %v568 = vand.u32 %v567, 4294901760
        %569 = vmatpush1.msra.mxu0 %v568
        %570 = vmatprep.subr.mxu0 0.0
        %571 = vmatpush2.msra.mxu0 0.0
        %572 = vmatprep.subr.mxu0 0.0
        %573 = vmatpush2.msra.mxu0 0.0
        %574 = vmatprep.subr.mxu0 0.0
        %575 = vmatpush2.msra.mxu0 0.0
        %576 = vmatprep.subr.mxu0 0.0
        %577 = vmatpush2.msra.mxu0 0.0
        %578 = vmatprep.subr.mxu0 0.0
        %579 = vmatpush2.msra.mxu0 0.0
        %580 = vmatprep.subr.mxu0 0.0
        %581 = vmatpush2.msra.mxu0 0.0
        %582 = vmatprep.subr.mxu0 0.0
        %583 = vmatpush2.msra.mxu0 0.0
        %584 = vmatprep.subr.mxu0 0.0
        %585 = vmatpush2.msra.mxu0 0.0
        %586 = vmatprep.subr.mxu0 0.0
        %587 = vmatpush2.msra.mxu0 0.0
        %588 = vmatprep.subr.mxu0 0.0
        %589 = vmatpush2.msra.mxu0 0.0
        %590 = vmatprep.subr.mxu0 0.0
        %591 = vmatpush2.msra.mxu0 0.0
        %592 = vmatprep.subr.mxu0 0.0
        %593 = vmatpush2.msra.mxu0 0.0
        %594 = vmatprep.subr.mxu0 0.0
        %595 = vmatpush2.msra.mxu0 0.0
        %596 = vmatprep.subr.mxu0 0.0
        %597 = vmatpush2.msra.mxu0 0.0
        %598 = vmatprep.subr.mxu0 0.0
        %599 = vmatpush2.msra.mxu0 0.0
        %600 = vmatprep.subr.mxu0 0.0
        %601 = vmatpush2.msra.mxu0 0.0
        %602 = vmatprep.mubr.f32.mxu0 0.0
        %v603 = vand.u32 %v197, 4294901760
        %604 = vmatmul.mubr.f32.gmra.mxu0 %v603
        %v605 = vpop.f32.mrf.mxu0
        %v606 = vadd.f32 %v523, %v605
        %v607 = vpop.f32.mrf.mxu0
        %608 = vdwg.mxu0
        %609 = vmatprep.subr.mxu0 0.0
        %610 = vmatpush1.msra.mxu0 0.0
        %611 = vmatprep.subr.mxu0 0.0
        %612 = vmatpush1.msra.mxu0 0.0
        %613 = vmatprep.subr.mxu0 0.0
        %614 = vmatpush1.msra.mxu0 0.0
        %615 = vmatprep.subr.mxu0 0.0
        %616 = vmatpush1.msra.mxu0 0.0
        %617 = vmatprep.subr.mxu0 0.0
        %618 = vmatpush1.msra.mxu0 0.0
        %619 = vmatprep.subr.mxu0 0.0
        %620 = vmatpush1.msra.mxu0 0.0
        %621 = vmatprep.subr.mxu0 0.0
        %622 = vmatpush1.msra.mxu0 0.0
        %623 = vmatprep.subr.mxu0 0.0
        %624 = vmatpush1.msra.mxu0 0.0
        %625 = vmatprep.subr.mxu0 0.0
        %626 = vmatpush1.msra.mxu0 0.0
        %627 = vmatprep.subr.mxu0 0.0
        %628 = vmatpush1.msra.mxu0 0.0
        %629 = vmatprep.subr.mxu0 0.0
        %630 = vmatpush1.msra.mxu0 0.0
        %631 = vmatprep.subr.mxu0 0.0
        %632 = vmatpush1.msra.mxu0 0.0
        %633 = vmatprep.subr.mxu0 0.0
        %v634 = vand.u32 %v193, 4294901760
        %635 = vmatpush1.msra.mxu0 %v634
        %636 = vmatprep.subr.mxu0 0.0
        %v637 = vand.u32 %v192, 4294901760
        %638 = vmatpush1.msra.mxu0 %v637
        %639 = vmatprep.subr.mxu0 0.0
        %v640 = vand.u32 %v191, 4294901760
        %641 = vmatpush1.msra.mxu0 %v640
        %642 = vmatprep.subr.mxu0 0.0
        %v643 = vand.u32 %v190, 4294901760
        %644 = vmatpush1.msra.mxu0 %v643
        %645 = vmatprep.subr.mxu0 0.0
        %646 = vmatpush2.msra.mxu0 0.0
        %647 = vmatprep.subr.mxu0 0.0
        %648 = vmatpush2.msra.mxu0 0.0
        %649 = vmatprep.subr.mxu0 0.0
        %650 = vmatpush2.msra.mxu0 0.0
        %651 = vmatprep.subr.mxu0 0.0
        %652 = vmatpush2.msra.mxu0 0.0
        %653 = vmatprep.subr.mxu0 0.0
        %654 = vmatpush2.msra.mxu0 0.0
        %655 = vmatprep.subr.mxu0 0.0
        %656 = vmatpush2.msra.mxu0 0.0
        %657 = vmatprep.subr.mxu0 0.0
        %658 = vmatpush2.msra.mxu0 0.0
        %659 = vmatprep.subr.mxu0 0.0
        %660 = vmatpush2.msra.mxu0 0.0
        %661 = vmatprep.subr.mxu0 0.0
        %662 = vmatpush2.msra.mxu0 0.0
        %663 = vmatprep.subr.mxu0 0.0
        %664 = vmatpush2.msra.mxu0 0.0
        %665 = vmatprep.subr.mxu0 0.0
        %666 = vmatpush2.msra.mxu0 0.0
        %667 = vmatprep.subr.mxu0 0.0
        %668 = vmatpush2.msra.mxu0 0.0
        %669 = vmatprep.subr.mxu0 0.0
        %670 = vmatpush2.msra.mxu0 0.0
        %671 = vmatprep.subr.mxu0 0.0
        %672 = vmatpush2.msra.mxu0 0.0
        %673 = vmatprep.subr.mxu0 0.0
        %674 = vmatpush2.msra.mxu0 0.0
        %675 = vmatprep.subr.mxu0 0.0
        %676 = vmatpush2.msra.mxu0 0.0
        %677 = vmatprep.mubr.f32.mxu0 0.0
        %v678 = vand.u32 %v197, 4294901760
        %679 = vmatmul.mubr.f32.gmra.mxu0 %v678
        %v680 = vpop.f32.mrf.mxu0
        %v681 = vadd.f32 %v606, %v680
        %v682 = vpop.f32.mrf.mxu0
        %683 = vdwg.mxu0
        %684 = vst [vmem:[%s176] sm:$0xff] %v681
        %s685 = sand.u32 %s94, 1
        %s686 = scalar_lea.sflag [#allocation4], %s685
        %s687 = sand.u32 %s94, 1
        %s688 = smul.addr %s687, 8
        %s689 = scalar_lea.vmem [#allocation5], %s688
        // Predicated region
        $region37: #{tpu_custom_call.1} parent=31 // pred_check
          %p690 = pneg %p104
        $region38: #{tpu_custom_call.1} parent=31 // pred_check_branch
          %692 = sbr.rel (%p690) target = $region40
        $region39: #{tpu_custom_call.1} parent=31 // pred_region
          %s694 = ssub.s32 128, 128
          %695 = vsyncadd %s686, %s694
          %s696 = smul.addr %s18, 128
          %s697 = scalar_lea.hbm %s3, %s696
          %s699 = sshll.u32 %s689, 4
          %s700 = int_to_ptr.vmem [resolvable:$true] %s699
          %702 = dma.vmem_to_hbm [thread:$0]  %s700, 128, %s697, %s686
        $region40: #{tpu_custom_call.1} parent=31 // pred_fallthru
          _
      $region32: #{tpu_custom_call.1} parent=5 // pred_fallthru
        _
      %p703 = scmp.le.s32.totalorder 2, %s13
      // Predicated region
      $region41: #{tpu_custom_call.1} parent=5 // pred_check
        %p704 = pneg %p703
      $region42: #{tpu_custom_call.1} parent=5 // pred_check_branch
        %706 = sbr.rel (%p704) target = $region44
      $region43: #{tpu_custom_call.1} parent=5 // pred_region
        %s707 = ssub.s32 %s13, 2
        // Predicated region
        $region45: #{tpu_custom_call.1} parent=43 // pred_check
          %p708 = pneg %p110
        $region46: #{tpu_custom_call.1} parent=43 // pred_check_branch
          %710 = sbr.rel (%p708) target = $region48
        $region47: #{tpu_custom_call.1} parent=43 // pred_region
          %s711 = sand.u32 %s95, 1
          %s712 = scalar_lea.sflag [#allocation4], %s711
          %s713 = sand.u32 %s95, 1
          %s714 = smul.addr %s713, 8
          %s715 = scalar_lea.vmem [#allocation5], %s714
          %716 = dma.done %s712, 128
        $region48: #{tpu_custom_call.1} parent=43 // pred_fallthru
          _
      $region44: #{tpu_custom_call.1} parent=5 // pred_fallthru
        _
    $region6: #{tpu_custom_call.1} parent=1 // loop_footer
      %s17 = sadd.s32 1, %s13
    $region7: #{tpu_custom_call.1} parent=1 // loop_footer_branch
      %12 = sbr.rel target = $region3
    $region8: #{tpu_custom_call.1} parent=1 // loop_exit
      _
    %717 = vsyncpa [#allocation3], 1
    %s718 = scalar_lea.sflag [#allocation3], 1
    %719 = vsyncpa %s718, 1
    %720 = vsyncpa [#allocation4], 1
    %s721 = scalar_lea.sflag [#allocation4], 1
    %722 = vsyncpa %s721, 1

// kernel: tpu_custom_call.1
$region0: #{tpu_custom_call.1}
  #allocation0 [shape = 'u32[]', space=smem, size = 0x4, offset = 0x4, fixed_abs, tag = 'smem constant byte address 0x4 - core index']
  #allocation1 [shape = 'u32[144,128]{1,0:T(1,128)}', space=vmem, size = 0x12000, scoped, tag = 'internal scratch']
  %s0 = inlined_call_operand.vmem [shape: s32[16,1], index: 0, kind: input, shape index: {}]
  %s1 = inlined_call_operand.hbm [shape: f32[32,128], index: 1, kind: input, shape index: {}]
  %s2 = inlined_call_operand.vmem [shape: f32[8,128], index: 2, kind: input, shape index: {}]
  %s3 = inlined_call_operand.hbm [shape: f32[16,128], index: 3, kind: output, shape index: {}]
  %s4 = sld [smem:[#allocation0]]
  $region49: #{tpu_custom_call.1} parent=0
    _
  %s6 = ssub.s32 1, %s4
  %s7 = scalar_select 0, %s6, %s4
  $region1: #{tpu_custom_call.1} parent=0
    #allocation2 [shape = 'u8[16384]{0}', space=vmem, size = 0x4000, scoped, tag = 'input window, operand 1, single buffered']
    #allocation3 [shape = 's32[2]{0}', space=sflag, size = 0x8, scoped, tag = 'scoped memory for tpu_custom_call.1']
    #allocation4 [shape = 's32[2]{0}', space=sflag, size = 0x8, scoped, tag = 'scoped memory for tpu_custom_call.1']
    #allocation5 [shape = 'u8[8192]{0}', space=vmem, size = 0x2000, scoped, tag = 'output window, operand 0']
    %8 = vsyncpa [#allocation3], 0
    %9 = vsyncpa [#allocation4], 0
    %s10 = scalar_lea.sflag [#allocation4], 1
    %11 = vsyncpa %s10, 0
    loop: start=0, step=1, limit=4
    $region2: #{tpu_custom_call.1} parent=1 // loop_pre_header
      _
    $region3: #{tpu_custom_call.1} parent=1 // loop_header
      %s13 = sphi 0, %s17
      %p14 = scmp.ge.s32.totalorder %s13, 4
      %s23 = sphi 0, %s25
      %s26 = sphi 0, %s23
      %s27 = sphi 0, %s26
      %s43 = sphi 0, %s27
      %s47 = sphi 0, %s47
      %s49 = sphi 0, %s47
      %s50 = sphi 0, %s49
      %s64 = sphi 0, %s50
      %s68 = sphi 0, %s68
      %s70 = sphi 0, %s68
      %s71 = sphi 0, %s70
      %s85 = sphi 0, %s71
      %s91 = sphi 0, %s93
      %s94 = sphi 0, %s91
      %s95 = sphi 0, %s94
      %s111 = sphi 0, %s95
    $region4: #{tpu_custom_call.1} parent=1 // loop_header_branch
      %16 = sbr.rel (%p14) target = $region8
    $region5: #{tpu_custom_call.1} parent=1 // loop_body
      %s18 = ssub.s32 %s13, 1
      %s19 = ssub.s32 %s13, 2
      %s20 = sadd.s32 %s13, 1
      %s21 = ssub.s32 %s13, %s20
      %p22 = scmp.eq.s32.totalorder %s21, 0
      %s24 = sadd.s32 %s23, 1
      %s25 = scalar_select %p22, %s23, %s24
      %p28 = pneg %p22
      %p29 = scmp.eq.s32.totalorder %s13, 1
      %p30 = por %p28, %p29
      %p31 = scmp.ne.s32.totalorder %s23, %s26
      %p32 = scmp.eq.s32.totalorder %s13, 0
      %p33 = por %p31, %p32
      %p34 = scmp.ne.s32.totalorder %s23, %s26
      %p35 = scmp.eq.s32.totalorder %s18, 1
      %p36 = por %p34, %p35
      %p37 = scmp.ne.s32.totalorder %s26, %s27
      %p38 = scmp.eq.s32.totalorder %s18, 0
      %p39 = por %p37, %p38
      %p40 = scmp.ne.s32.totalorder %s26, %s27
      %p41 = scmp.eq.s32.totalorder %s19, 1
      %p42 = por %p40, %p41
      %p44 = scmp.ne.s32.totalorder %s27, %s43
      %p45 = scmp.eq.s32.totalorder %s19, 0
      %p46 = por %p44, %p45
      %s48 = sadd.s32 %s47, 1
      %p51 = scmp.eq.s32.totalorder %s13, 1
      %p52 = scmp.ne.s32.totalorder %s47, %s49
      %p53 = scmp.eq.s32.totalorder %s13, 0
      %p54 = por %p52, %p53
      %p55 = scmp.ne.s32.totalorder %s47, %s49
      %p56 = scmp.eq.s32.totalorder %s18, 1
      %p57 = por %p55, %p56
      %p58 = scmp.ne.s32.totalorder %s49, %s50
      %p59 = scmp.eq.s32.totalorder %s18, 0
      %p60 = por %p58, %p59
      %p61 = scmp.ne.s32.totalorder %s49, %s50
      %p62 = scmp.eq.s32.totalorder %s19, 1
      %p63 = por %p61, %p62
      %p65 = scmp.ne.s32.totalorder %s50, %s64
      %p66 = scmp.eq.s32.totalorder %s19, 0
      %p67 = por %p65, %p66
      %s69 = sadd.s32 %s68, 1
      %p72 = scmp.eq.s32.totalorder %s13, 1
      %p73 = scmp.ne.s32.totalorder %s68, %s70
      %p74 = scmp.eq.s32.totalorder %s13, 0
      %p75 = por %p73, %p74
      %p76 = scmp.ne.s32.totalorder %s68, %s70
      %p77 = scmp.eq.s32.totalorder %s18, 1
      %p78 = por %p76, %p77
      %p79 = scmp.ne.s32.totalorder %s70, %s71
      %p80 = scmp.eq.s32.totalorder %s18, 0
      %p81 = por %p79, %p80
      %p82 = scmp.ne.s32.totalorder %s70, %s71
      %p83 = scmp.eq.s32.totalorder %s19, 1
      %p84 = por %p82, %p83
      %p86 = scmp.ne.s32.totalorder %s71, %s85
      %p87 = scmp.eq.s32.totalorder %s19, 0
      %p88 = por %p86, %p87
      %s89 = ssub.s32 %s13, %s20
      %p90 = scmp.eq.s32.totalorder %s89, 0
      %s92 = sadd.s32 %s91, 1
      %s93 = scalar_select %p90, %s91, %s92
      %p96 = pneg %p90
      %p97 = scmp.eq.s32.totalorder %s13, 1
      %p98 = por %p96, %p97
      %p99 = scmp.ne.s32.totalorder %s91, %s94
      %p100 = scmp.eq.s32.totalorder %s13, 0
      %p101 = por %p99, %p100
      %p102 = scmp.ne.s32.totalorder %s91, %s94
      %p103 = scmp.eq.s32.totalorder %s18, 1
      %p104 = por %p102, %p103
      %p105 = scmp.ne.s32.totalorder %s94, %s95
      %p106 = scmp.eq.s32.totalorder %s18, 0
      %p107 = por %p105, %p106
      %p108 = scmp.ne.s32.totalorder %s94, %s95
      %p109 = scmp.eq.s32.totalorder %s19, 1
      %p110 = por %p108, %p109
      %p112 = scmp.ne.s32.totalorder %s95, %s111
      %p113 = scmp.eq.s32.totalorder %s19, 0
      %p114 = por %p112, %p113
      %p115 = scmp.le.s32.totalorder 1, %s13
      %p116 = scmp.lt.s32.totalorder %s13, 3
      %p117 = pnand %p115, %p116
      %p118 = pneg %p117
      // Predicated region
      $region9: #{tpu_custom_call.1} parent=5 // pred_check
        _
      $region10: #{tpu_custom_call.1} parent=5 // pred_check_branch
        %120 = sbr.rel (%p117) target = $region12
      $region11: #{tpu_custom_call.1} parent=5 // pred_region
        %s121 = ssub.s32 %s13, 1
        // Predicated region
        $region13: #{tpu_custom_call.1} parent=11 // pred_check
          %p122 = pneg %p60
        $region14: #{tpu_custom_call.1} parent=11 // pred_check_branch
          %124 = sbr.rel (%p122) target = $region16
        $region15: #{tpu_custom_call.1} parent=11 // pred_region
          %s126 = ssub.s32 512, 512
          %127 = vsyncadd [#allocation3], %s126
          %s128 = sshll.u32 [#allocation2], 4
          %s129 = int_to_ptr.vmem [resolvable:$true] %s128
          %134 = dma.hbm_to_vmem [thread:$0]  %s1, 512, %s129, [#allocation3], 128, 128, 8
        $region16: #{tpu_custom_call.1} parent=11 // pred_fallthru
          _
        // Predicated region
        $region17: #{tpu_custom_call.1} parent=11 // pred_check
          %p135 = pneg %p81
        $region18: #{tpu_custom_call.1} parent=11 // pred_check_branch
          %137 = sbr.rel (%p135) target = $region20
        $region19: #{tpu_custom_call.1} parent=11 // pred_region
          _
        $region20: #{tpu_custom_call.1} parent=11 // pred_fallthru
          _
      $region12: #{tpu_custom_call.1} parent=5 // pred_fallthru
        _
      %p138 = scmp.lt.s32.totalorder %s13, 2
      // Predicated region
      $region21: #{tpu_custom_call.1} parent=5 // pred_check
        %p139 = pneg %p138
      $region22: #{tpu_custom_call.1} parent=5 // pred_check_branch
        %141 = sbr.rel (%p139) target = $region24
      $region23: #{tpu_custom_call.1} parent=5 // pred_region
        // Predicated region
        $region25: #{tpu_custom_call.1} parent=23 // pred_check
          %p142 = pneg %p33
        $region26: #{tpu_custom_call.1} parent=23 // pred_check_branch
          %144 = sbr.rel (%p142) target = $region28
        $region27: #{tpu_custom_call.1} parent=23 // pred_region
          %p145 = scmp.lt.s32.totalorder %s13, 1
          %s146 = scalar_select %p145, %s13, 1
          %s147 = smul.addr %s146, 8
          %s148 = scalar_lea.vmem %s0, %s147
        $region28: #{tpu_custom_call.1} parent=23 // pred_fallthru
          _
      $region24: #{tpu_custom_call.1} parent=5 // pred_fallthru
        _
      %p149 = scmp.le.s32.totalorder 1, %s13
      %p150 = scmp.lt.s32.totalorder %s13, 3
      %p151 = pnand %p149, %p150
      %p152 = pneg %p151
      // Predicated region
      $region29: #{tpu_custom_call.1} parent=5 // pred_check
        _
      $region30: #{tpu_custom_call.1} parent=5 // pred_check_branch
        %154 = sbr.rel (%p151) target = $region32
      $region31: #{tpu_custom_call.1} parent=5 // pred_region
        %s155 = ssub.s32 %s13, 1
        // Predicated region
        $region33: #{tpu_custom_call.1} parent=31 // pred_check
          %p156 = pneg %p60
        $region34: #{tpu_custom_call.1} parent=31 // pred_check_branch
          %158 = sbr.rel (%p156) target = $region36
        $region35: #{tpu_custom_call.1} parent=31 // pred_region
          %159 = dma.done [#allocation3], 512
        $region36: #{tpu_custom_call.1} parent=31 // pred_fallthru
          _
        %p160 = scmp.lt.s32.totalorder %s18, 1
        %s161 = scalar_select %p160, %s18, 1
        %s162 = smul.addr %s161, 8
        %s163 = scalar_lea.vmem %s0, %s162
        %p164 = pneg %p39
        %p165 = pneg %p36
        %p166 = pneg %p60
        %p167 = pneg %p57
        %p168 = pneg %p81
        %p169 = pneg %p78
        %p170 = pneg %p107
        %p171 = pneg %p104
        %s172 = sand.u32 %s94, 1
        %s173 = scalar_lea.sflag [#allocation4], %s172
        %s174 = sand.u32 %s94, 1
        %s175 = smul.addr %s174, 8
        %s176 = scalar_lea.vmem [#allocation5], %s175
        %p177 = scmp.lt.s32.totalorder %s18, 1
        %s178 = scalar_select %p177, %s18, 1
        %s179 = smul.addr %s178, 8
        %s180 = scalar_lea.vmem %s0, %s179
        %v181 = vld [vmem:[%s180] sm:$0xff]
        %v182 = vlaneseq
        %v183 = vand.u32 %v182, 127
        %184 = vset.pattern.permute.xlu0 0
        %185 = vperm.xlu0 %184, %v181
        %v186 = vpop.permute.xlu0 %185
        %vm187 = vcmp.eq.s32.totalorder %v183, %v186
        %v188 = vsel %vm187, 1, 0
        %v189 = vcvt.s32.f32 %v188
        %v190 = vld [vmem:[#allocation2] sm:$0xff]
        %v191 = vld [vmem:[#allocation2 + $0x8] sm:$0xff]
        %v192 = vld [vmem:[#allocation2 + $0x10] sm:$0xff]
        %v193 = vld [vmem:[#allocation2 + $0x18] sm:$0xff]
        %v194 = vld [vmem:[%s2] sm:$0xff]
        %vm195 = vcmask 261120
        %v197 = vsel %vm195, %v189, 0
        %199 = vmatprep.subr.mxu0 0.0
        %200 = vmatpush1.msra.mxu0 0.0
        %201 = vmatprep.subr.mxu0 0.0
        %202 = vmatpush1.msra.mxu0 0.0
        %203 = vmatprep.subr.mxu0 0.0
        %204 = vmatpush1.msra.mxu0 0.0
        %205 = vmatprep.subr.mxu0 0.0
        %206 = vmatpush1.msra.mxu0 0.0
        %207 = vmatprep.subr.mxu0 0.0
        %208 = vmatpush1.msra.mxu0 0.0
        %209 = vmatprep.subr.mxu0 0.0
        %210 = vmatpush1.msra.mxu0 0.0
        %211 = vmatprep.subr.mxu0 0.0
        %212 = vmatpush1.msra.mxu0 0.0
        %213 = vmatprep.subr.mxu0 0.0
        %214 = vmatpush1.msra.mxu0 0.0
        %215 = vmatprep.subr.mxu0 0.0
        %216 = vmatpush1.msra.mxu0 0.0
        %217 = vmatprep.subr.mxu0 0.0
        %218 = vmatpush1.msra.mxu0 0.0
        %219 = vmatprep.subr.mxu0 0.0
        %220 = vmatpush1.msra.mxu0 0.0
        %221 = vmatprep.subr.mxu0 0.0
        %222 = vmatpush1.msra.mxu0 0.0
        %223 = vmatprep.subr.mxu0 0.0
        %v224 = vand.u32 %v193, 4294901760
        %225 = vmatpush1.msra.mxu0 %v224
        %226 = vmatprep.subr.mxu0 0.0
        %v227 = vand.u32 %v192, 4294901760
        %228 = vmatpush1.msra.mxu0 %v227
        %229 = vmatprep.subr.mxu0 0.0
        %v230 = vand.u32 %v191, 4294901760
        %231 = vmatpush1.msra.mxu0 %v230
        %232 = vmatprep.subr.mxu0 0.0
        %v233 = vand.u32 %v190, 4294901760
        %234 = vmatpush1.msra.mxu0 %v233
        %235 = vmatprep.subr.mxu0 0.0
        %236 = vmatpush2.msra.mxu0 0.0
        %237 = vmatprep.subr.mxu0 0.0
        %238 = vmatpush2.msra.mxu0 0.0
        %239 = vmatprep.subr.mxu0 0.0
        %240 = vmatpush2.msra.mxu0 0.0
        %241 = vmatprep.subr.mxu0 0.0
        %242 = vmatpush2.msra.mxu0 0.0
        %243 = vmatprep.subr.mxu0 0.0
        %244 = vmatpush2.msra.mxu0 0.0
        %245 = vmatprep.subr.mxu0 0.0
        %246 = vmatpush2.msra.mxu0 0.0
        %247 = vmatprep.subr.mxu0 0.0
        %248 = vmatpush2.msra.mxu0 0.0
        %249 = vmatprep.subr.mxu0 0.0
        %250 = vmatpush2.msra.mxu0 0.0
        %251 = vmatprep.subr.mxu0 0.0
        %252 = vmatpush2.msra.mxu0 0.0
        %253 = vmatprep.subr.mxu0 0.0
        %254 = vmatpush2.msra.mxu0 0.0
        %255 = vmatprep.subr.mxu0 0.0
        %256 = vmatpush2.msra.mxu0 0.0
        %257 = vmatprep.subr.mxu0 0.0
        %258 = vmatpush2.msra.mxu0 0.0
        %259 = vmatprep.subr.mxu0 0.0
        %260 = vmatpush2.msra.mxu0 0.0
        %261 = vmatprep.subr.mxu0 0.0
        %262 = vmatpush2.msra.mxu0 0.0
        %263 = vmatprep.subr.mxu0 0.0
        %264 = vmatpush2.msra.mxu0 0.0
        %265 = vmatprep.subr.mxu0 0.0
        %266 = vmatpush2.msra.mxu0 0.0
        %267 = vmatprep.mubr.f32.mxu0 0.0
        %v268 = vand.u32 %v197, 4294901760
        %v269 = vsub.f32 %v197, %v268
        %v270 = vand.u32 %v269, 4294901760
        %v271 = vsub.f32 %v269, %v270
        %v272 = vand.u32 %v271, 4294901760
        %273 = vmatmul.mubr.f32.gmra.mxu0 %v272
        %v274 = vpop.f32.mrf.mxu0
        %v275 = vadd.f32 %v194, %v274
        %v276 = vpop.f32.mrf.mxu0
        %277 = vdwg.mxu0
        %278 = vmatprep.subr.mxu0 0.0
        %279 = vmatpush1.msra.mxu0 0.0
        %280 = vmatprep.subr.mxu0 0.0
        %281 = vmatpush1.msra.mxu0 0.0
        %282 = vmatprep.subr.mxu0 0.0
        %283 = vmatpush1.msra.mxu0 0.0
        %284 = vmatprep.subr.mxu0 0.0
        %285 = vmatpush1.msra.mxu0 0.0
        %286 = vmatprep.subr.mxu0 0.0
        %287 = vmatpush1.msra.mxu0 0.0
        %288 = vmatprep.subr.mxu0 0.0
        %289 = vmatpush1.msra.mxu0 0.0
        %290 = vmatprep.subr.mxu0 0.0
        %291 = vmatpush1.msra.mxu0 0.0
        %292 = vmatprep.subr.mxu0 0.0
        %293 = vmatpush1.msra.mxu0 0.0
        %294 = vmatprep.subr.mxu0 0.0
        %295 = vmatpush1.msra.mxu0 0.0
        %296 = vmatprep.subr.mxu0 0.0
        %297 = vmatpush1.msra.mxu0 0.0
        %298 = vmatprep.subr.mxu0 0.0
        %299 = vmatpush1.msra.mxu0 0.0
        %300 = vmatprep.subr.mxu0 0.0
        %301 = vmatpush1.msra.mxu0 0.0
        %302 = vmatprep.subr.mxu0 0.0
        %v303 = vand.u32 %v193, 4294901760
        %v304 = vsub.f32 %v193, %v303
        %v305 = vand.u32 %v304, 4294901760
        %v306 = vsub.f32 %v304, %v305
        %v307 = vand.u32 %v306, 4294901760
        %308 = vmatpush1.msra.mxu0 %v307
        %309 = vmatprep.subr.mxu0 0.0
        %v310 = vand.u32 %v192, 4294901760
        %v311 = vsub.f32 %v192, %v310
        %v312 = vand.u32 %v311, 4294901760
        %v313 = vsub.f32 %v311, %v312
        %v314 = vand.u32 %v313, 4294901760
        %315 = vmatpush1.msra.mxu0 %v314
        %316 = vmatprep.subr.mxu0 0.0
        %v317 = vand.u32 %v191, 4294901760
        %v318 = vsub.f32 %v191, %v317
        %v319 = vand.u32 %v318, 4294901760
        %v320 = vsub.f32 %v318, %v319
        %v321 = vand.u32 %v320, 4294901760
        %322 = vmatpush1.msra.mxu0 %v321
        %323 = vmatprep.subr.mxu0 0.0
        %v324 = vand.u32 %v190, 4294901760
        %v325 = vsub.f32 %v190, %v324
        %v326 = vand.u32 %v325, 4294901760
        %v327 = vsub.f32 %v325, %v326
        %v328 = vand.u32 %v327, 4294901760
        %329 = vmatpush1.msra.mxu0 %v328
        %330 = vmatprep.subr.mxu0 0.0
        %331 = vmatpush2.msra.mxu0 0.0
        %332 = vmatprep.subr.mxu0 0.0
        %333 = vmatpush2.msra.mxu0 0.0
        %334 = vmatprep.subr.mxu0 0.0
        %335 = vmatpush2.msra.mxu0 0.0
        %336 = vmatprep.subr.mxu0 0.0
        %337 = vmatpush2.msra.mxu0 0.0
        %338 = vmatprep.subr.mxu0 0.0
        %339 = vmatpush2.msra.mxu0 0.0
        %340 = vmatprep.subr.mxu0 0.0
        %341 = vmatpush2.msra.mxu0 0.0
        %342 = vmatprep.subr.mxu0 0.0
        %343 = vmatpush2.msra.mxu0 0.0
        %344 = vmatprep.subr.mxu0 0.0
        %345 = vmatpush2.msra.mxu0 0.0
        %346 = vmatprep.subr.mxu0 0.0
        %347 = vmatpush2.msra.mxu0 0.0
        %348 = vmatprep.subr.mxu0 0.0
        %349 = vmatpush2.msra.mxu0 0.0
        %350 = vmatprep.subr.mxu0 0.0
        %351 = vmatpush2.msra.mxu0 0.0
        %352 = vmatprep.subr.mxu0 0.0
        %353 = vmatpush2.msra.mxu0 0.0
        %354 = vmatprep.subr.mxu0 0.0
        %355 = vmatpush2.msra.mxu0 0.0
        %356 = vmatprep.subr.mxu0 0.0
        %357 = vmatpush2.msra.mxu0 0.0
        %358 = vmatprep.subr.mxu0 0.0
        %359 = vmatpush2.msra.mxu0 0.0
        %360 = vmatprep.subr.mxu0 0.0
        %361 = vmatpush2.msra.mxu0 0.0
        %362 = vmatprep.mubr.f32.mxu0 0.0
        %v363 = vand.u32 %v197, 4294901760
        %364 = vmatmul.mubr.f32.gmra.mxu0 %v363
        %v365 = vpop.f32.mrf.mxu0
        %v366 = vadd.f32 %v275, %v365
        %v367 = vpop.f32.mrf.mxu0
        %368 = vdwg.mxu0
        %369 = vmatprep.subr.mxu0 0.0
        %370 = vmatpush1.msra.mxu0 0.0
        %371 = vmatprep.subr.mxu0 0.0
        %372 = vmatpush1.msra.mxu0 0.0
        %373 = vmatprep.subr.mxu0 0.0
        %374 = vmatpush1.msra.mxu0 0.0
        %375 = vmatprep.subr.mxu0 0.0
        %376 = vmatpush1.msra.mxu0 0.0
        %377 = vmatprep.subr.mxu0 0.0
        %378 = vmatpush1.msra.mxu0 0.0
        %379 = vmatprep.subr.mxu0 0.0
        %380 = vmatpush1.msra.mxu0 0.0
        %381 = vmatprep.subr.mxu0 0.0
        %382 = vmatpush1.msra.mxu0 0.0
        %383 = vmatprep.subr.mxu0 0.0
        %384 = vmatpush1.msra.mxu0 0.0
        %385 = vmatprep.subr.mxu0 0.0
        %386 = vmatpush1.msra.mxu0 0.0
        %387 = vmatprep.subr.mxu0 0.0
        %388 = vmatpush1.msra.mxu0 0.0
        %389 = vmatprep.subr.mxu0 0.0
        %390 = vmatpush1.msra.mxu0 0.0
        %391 = vmatprep.subr.mxu0 0.0
        %392 = vmatpush1.msra.mxu0 0.0
        %393 = vmatprep.subr.mxu0 0.0
        %v394 = vand.u32 %v193, 4294901760
        %v395 = vsub.f32 %v193, %v394
        %396 = vmatpush1.msra.mxu0 %v395
        %397 = vmatprep.subr.mxu0 0.0
        %v398 = vand.u32 %v192, 4294901760
        %v399 = vsub.f32 %v192, %v398
        %400 = vmatpush1.msra.mxu0 %v399
        %401 = vmatprep.subr.mxu0 0.0
        %v402 = vand.u32 %v191, 4294901760
        %v403 = vsub.f32 %v191, %v402
        %404 = vmatpush1.msra.mxu0 %v403
        %405 = vmatprep.subr.mxu0 0.0
        %v406 = vand.u32 %v190, 4294901760
        %v407 = vsub.f32 %v190, %v406
        %408 = vmatpush1.msra.mxu0 %v407
        %409 = vmatprep.subr.mxu0 0.0
        %410 = vmatpush2.msra.mxu0 0.0
        %411 = vmatprep.subr.mxu0 0.0
        %412 = vmatpush2.msra.mxu0 0.0
        %413 = vmatprep.subr.mxu0 0.0
        %414 = vmatpush2.msra.mxu0 0.0
        %415 = vmatprep.subr.mxu0 0.0
        %416 = vmatpush2.msra.mxu0 0.0
        %417 = vmatprep.subr.mxu0 0.0
        %418 = vmatpush2.msra.mxu0 0.0
        %419 = vmatprep.subr.mxu0 0.0
        %420 = vmatpush2.msra.mxu0 0.0
        %421 = vmatprep.subr.mxu0 0.0
        %422 = vmatpush2.msra.mxu0 0.0
        %423 = vmatprep.subr.mxu0 0.0
        %424 = vmatpush2.msra.mxu0 0.0
        %425 = vmatprep.subr.mxu0 0.0
        %426 = vmatpush2.msra.mxu0 0.0
        %427 = vmatprep.subr.mxu0 0.0
        %428 = vmatpush2.msra.mxu0 0.0
        %429 = vmatprep.subr.mxu0 0.0
        %430 = vmatpush2.msra.mxu0 0.0
        %431 = vmatprep.subr.mxu0 0.0
        %432 = vmatpush2.msra.mxu0 0.0
        %433 = vmatprep.subr.mxu0 0.0
        %434 = vmatpush2.msra.mxu0 0.0
        %435 = vmatprep.subr.mxu0 0.0
        %436 = vmatpush2.msra.mxu0 0.0
        %437 = vmatprep.subr.mxu0 0.0
        %438 = vmatpush2.msra.mxu0 0.0
        %439 = vmatprep.subr.mxu0 0.0
        %440 = vmatpush2.msra.mxu0 0.0
        %441 = vmatprep.mubr.f32.mxu0 0.0
        %v442 = vand.u32 %v197, 4294901760
        %v443 = vsub.f32 %v197, %v442
        %444 = vmatmul.mubr.f32.gmra.mxu0 %v443
        %v445 = vpop.f32.mrf.mxu0
        %v446 = vadd.f32 %v366, %v445
        %v447 = vpop.f32.mrf.mxu0
        %448 = vdwg.mxu0
        %449 = vmatprep.subr.mxu0 0.0
        %450 = vmatpush1.msra.mxu0 0.0
        %451 = vmatprep.subr.mxu0 0.0
        %452 = vmatpush1.msra.mxu0 0.0
        %453 = vmatprep.subr.mxu0 0.0
        %454 = vmatpush1.msra.mxu0 0.0
        %455 = vmatprep.subr.mxu0 0.0
        %456 = vmatpush1.msra.mxu0 0.0
        %457 = vmatprep.subr.mxu0 0.0
        %458 = vmatpush1.msra.mxu0 0.0
        %459 = vmatprep.subr.mxu0 0.0
        %460 = vmatpush1.msra.mxu0 0.0
        %461 = vmatprep.subr.mxu0 0.0
        %462 = vmatpush1.msra.mxu0 0.0
        %463 = vmatprep.subr.mxu0 0.0
        %464 = vmatpush1.msra.mxu0 0.0
        %465 = vmatprep.subr.mxu0 0.0
        %466 = vmatpush1.msra.mxu0 0.0
        %467 = vmatprep.subr.mxu0 0.0
        %468 = vmatpush1.msra.mxu0 0.0
        %469 = vmatprep.subr.mxu0 0.0
        %470 = vmatpush1.msra.mxu0 0.0
        %471 = vmatprep.subr.mxu0 0.0
        %472 = vmatpush1.msra.mxu0 0.0
        %473 = vmatprep.subr.mxu0 0.0
        %v474 = vand.u32 %v193, 4294901760
        %475 = vmatpush1.msra.mxu0 %v474
        %476 = vmatprep.subr.mxu0 0.0
        %v477 = vand.u32 %v192, 4294901760
        %478 = vmatpush1.msra.mxu0 %v477
        %479 = vmatprep.subr.mxu0 0.0
        %v480 = vand.u32 %v191, 4294901760
        %481 = vmatpush1.msra.mxu0 %v480
        %482 = vmatprep.subr.mxu0 0.0
        %v483 = vand.u32 %v190, 4294901760
        %484 = vmatpush1.msra.mxu0 %v483
        %485 = vmatprep.subr.mxu0 0.0
        %486 = vmatpush2.msra.mxu0 0.0
        %487 = vmatprep.subr.mxu0 0.0
        %488 = vmatpush2.msra.mxu0 0.0
        %489 = vmatprep.subr.mxu0 0.0
        %490 = vmatpush2.msra.mxu0 0.0
        %491 = vmatprep.subr.mxu0 0.0
        %492 = vmatpush2.msra.mxu0 0.0
        %493 = vmatprep.subr.mxu0 0.0
        %494 = vmatpush2.msra.mxu0 0.0
        %495 = vmatprep.subr.mxu0 0.0
        %496 = vmatpush2.msra.mxu0 0.0
        %497 = vmatprep.subr.mxu0 0.0
        %498 = vmatpush2.msra.mxu0 0.0
        %499 = vmatprep.subr.mxu0 0.0
        %500 = vmatpush2.msra.mxu0 0.0
        %501 = vmatprep.subr.mxu0 0.0
        %502 = vmatpush2.msra.mxu0 0.0
        %503 = vmatprep.subr.mxu0 0.0
        %504 = vmatpush2.msra.mxu0 0.0
        %505 = vmatprep.subr.mxu0 0.0
        %506 = vmatpush2.msra.mxu0 0.0
        %507 = vmatprep.subr.mxu0 0.0
        %508 = vmatpush2.msra.mxu0 0.0
        %509 = vmatprep.subr.mxu0 0.0
        %510 = vmatpush2.msra.mxu0 0.0
        %511 = vmatprep.subr.mxu0 0.0
        %512 = vmatpush2.msra.mxu0 0.0
        %513 = vmatprep.subr.mxu0 0.0
        %514 = vmatpush2.msra.mxu0 0.0
        %515 = vmatprep.subr.mxu0 0.0
        %516 = vmatpush2.msra.mxu0 0.0
        %517 = vmatprep.mubr.f32.mxu0 0.0
        %v518 = vand.u32 %v197, 4294901760
        %v519 = vsub.f32 %v197, %v518
        %v520 = vand.u32 %v519, 4294901760
        %521 = vmatmul.mubr.f32.gmra.mxu0 %v520
        %v522 = vpop.f32.mrf.mxu0
        %v523 = vadd.f32 %v446, %v522
        %v524 = vpop.f32.mrf.mxu0
        %525 = vdwg.mxu0
        %526 = vmatprep.subr.mxu0 0.0
        %527 = vmatpush1.msra.mxu0 0.0
        %528 = vmatprep.subr.mxu0 0.0
        %529 = vmatpush1.msra.mxu0 0.0
        %530 = vmatprep.subr.mxu0 0.0
        %531 = vmatpush1.msra.mxu0 0.0
        %532 = vmatprep.subr.mxu0 0.0
        %533 = vmatpush1.msra.mxu0 0.0
        %534 = vmatprep.subr.mxu0 0.0
        %535 = vmatpush1.msra.mxu0 0.0
        %536 = vmatprep.subr.mxu0 0.0
        %537 = vmatpush1.msra.mxu0 0.0
        %538 = vmatprep.subr.mxu0 0.0
        %539 = vmatpush1.msra.mxu0 0.0
        %540 = vmatprep.subr.mxu0 0.0
        %541 = vmatpush1.msra.mxu0 0.0
        %542 = vmatprep.subr.mxu0 0.0
        %543 = vmatpush1.msra.mxu0 0.0
        %544 = vmatprep.subr.mxu0 0.0
        %545 = vmatpush1.msra.mxu0 0.0
        %546 = vmatprep.subr.mxu0 0.0
        %547 = vmatpush1.msra.mxu0 0.0
        %548 = vmatprep.subr.mxu0 0.0
        %549 = vmatpush1.msra.mxu0 0.0
        %550 = vmatprep.subr.mxu0 0.0
        %v551 = vand.u32 %v193, 4294901760
        %v552 = vsub.f32 %v193, %v551
        %v553 = vand.u32 %v552, 4294901760
        %554 = vmatpush1.msra.mxu0 %v553
        %555 = vmatprep.subr.mxu0 0.0
        %v556 = vand.u32 %v192, 4294901760
        %v557 = vsub.f32 %v192, %v556
        %v558 = vand.u32 %v557, 4294901760
        %559 = vmatpush1.msra.mxu0 %v558
        %560 = vmatprep.subr.mxu0 0.0
        %v561 = vand.u32 %v191, 4294901760
        %v562 = vsub.f32 %v191, %v561
        %v563 = vand.u32 %v562, 4294901760
        %564 = vmatpush1.msra.mxu0 %v563
        %565 = vmatprep.subr.mxu0 0.0
        %v566 = vand.u32 %v190, 4294901760
        %v567 = vsub.f32 %v190, %v566
        %v568 = vand.u32 %v567, 4294901760
        %569 = vmatpush1.msra.mxu0 %v568
        %570 = vmatprep.subr.mxu0 0.0
        %571 = vmatpush2.msra.mxu0 0.0
        %572 = vmatprep.subr.mxu0 0.0
        %573 = vmatpush2.msra.mxu0 0.0
        %574 = vmatprep.subr.mxu0 0.0
        %575 = vmatpush2.msra.mxu0 0.0
        %576 = vmatprep.subr.mxu0 0.0
        %577 = vmatpush2.msra.mxu0 0.0
        %578 = vmatprep.subr.mxu0 0.0
        %579 = vmatpush2.msra.mxu0 0.0
        %580 = vmatprep.subr.mxu0 0.0
        %581 = vmatpush2.msra.mxu0 0.0
        %582 = vmatprep.subr.mxu0 0.0
        %583 = vmatpush2.msra.mxu0 0.0
        %584 = vmatprep.subr.mxu0 0.0
        %585 = vmatpush2.msra.mxu0 0.0
        %586 = vmatprep.subr.mxu0 0.0
        %587 = vmatpush2.msra.mxu0 0.0
        %588 = vmatprep.subr.mxu0 0.0
        %589 = vmatpush2.msra.mxu0 0.0
        %590 = vmatprep.subr.mxu0 0.0
        %591 = vmatpush2.msra.mxu0 0.0
        %592 = vmatprep.subr.mxu0 0.0
        %593 = vmatpush2.msra.mxu0 0.0
        %594 = vmatprep.subr.mxu0 0.0
        %595 = vmatpush2.msra.mxu0 0.0
        %596 = vmatprep.subr.mxu0 0.0
        %597 = vmatpush2.msra.mxu0 0.0
        %598 = vmatprep.subr.mxu0 0.0
        %599 = vmatpush2.msra.mxu0 0.0
        %600 = vmatprep.subr.mxu0 0.0
        %601 = vmatpush2.msra.mxu0 0.0
        %602 = vmatprep.mubr.f32.mxu0 0.0
        %v603 = vand.u32 %v197, 4294901760
        %604 = vmatmul.mubr.f32.gmra.mxu0 %v603
        %v605 = vpop.f32.mrf.mxu0
        %v606 = vadd.f32 %v523, %v605
        %v607 = vpop.f32.mrf.mxu0
        %608 = vdwg.mxu0
        %609 = vmatprep.subr.mxu0 0.0
        %610 = vmatpush1.msra.mxu0 0.0
        %611 = vmatprep.subr.mxu0 0.0
        %612 = vmatpush1.msra.mxu0 0.0
        %613 = vmatprep.subr.mxu0 0.0
        %614 = vmatpush1.msra.mxu0 0.0
        %615 = vmatprep.subr.mxu0 0.0
        %616 = vmatpush1.msra.mxu0 0.0
        %617 = vmatprep.subr.mxu0 0.0
        %618 = vmatpush1.msra.mxu0 0.0
        %619 = vmatprep.subr.mxu0 0.0
        %620 = vmatpush1.msra.mxu0 0.0
        %621 = vmatprep.subr.mxu0 0.0
        %622 = vmatpush1.msra.mxu0 0.0
        %623 = vmatprep.subr.mxu0 0.0
        %624 = vmatpush1.msra.mxu0 0.0
        %625 = vmatprep.subr.mxu0 0.0
        %626 = vmatpush1.msra.mxu0 0.0
        %627 = vmatprep.subr.mxu0 0.0
        %628 = vmatpush1.msra.mxu0 0.0
        %629 = vmatprep.subr.mxu0 0.0
        %630 = vmatpush1.msra.mxu0 0.0
        %631 = vmatprep.subr.mxu0 0.0
        %632 = vmatpush1.msra.mxu0 0.0
        %633 = vmatprep.subr.mxu0 0.0
        %v634 = vand.u32 %v193, 4294901760
        %635 = vmatpush1.msra.mxu0 %v634
        %636 = vmatprep.subr.mxu0 0.0
        %v637 = vand.u32 %v192, 4294901760
        %638 = vmatpush1.msra.mxu0 %v637
        %639 = vmatprep.subr.mxu0 0.0
        %v640 = vand.u32 %v191, 4294901760
        %641 = vmatpush1.msra.mxu0 %v640
        %642 = vmatprep.subr.mxu0 0.0
        %v643 = vand.u32 %v190, 4294901760
        %644 = vmatpush1.msra.mxu0 %v643
        %645 = vmatprep.subr.mxu0 0.0
        %646 = vmatpush2.msra.mxu0 0.0
        %647 = vmatprep.subr.mxu0 0.0
        %648 = vmatpush2.msra.mxu0 0.0
        %649 = vmatprep.subr.mxu0 0.0
        %650 = vmatpush2.msra.mxu0 0.0
        %651 = vmatprep.subr.mxu0 0.0
        %652 = vmatpush2.msra.mxu0 0.0
        %653 = vmatprep.subr.mxu0 0.0
        %654 = vmatpush2.msra.mxu0 0.0
        %655 = vmatprep.subr.mxu0 0.0
        %656 = vmatpush2.msra.mxu0 0.0
        %657 = vmatprep.subr.mxu0 0.0
        %658 = vmatpush2.msra.mxu0 0.0
        %659 = vmatprep.subr.mxu0 0.0
        %660 = vmatpush2.msra.mxu0 0.0
        %661 = vmatprep.subr.mxu0 0.0
        %662 = vmatpush2.msra.mxu0 0.0
        %663 = vmatprep.subr.mxu0 0.0
        %664 = vmatpush2.msra.mxu0 0.0
        %665 = vmatprep.subr.mxu0 0.0
        %666 = vmatpush2.msra.mxu0 0.0
        %667 = vmatprep.subr.mxu0 0.0
        %668 = vmatpush2.msra.mxu0 0.0
        %669 = vmatprep.subr.mxu0 0.0
        %670 = vmatpush2.msra.mxu0 0.0
        %671 = vmatprep.subr.mxu0 0.0
        %672 = vmatpush2.msra.mxu0 0.0
        %673 = vmatprep.subr.mxu0 0.0
        %674 = vmatpush2.msra.mxu0 0.0
        %675 = vmatprep.subr.mxu0 0.0
        %676 = vmatpush2.msra.mxu0 0.0
        %677 = vmatprep.mubr.f32.mxu0 0.0
        %v678 = vand.u32 %v197, 4294901760
        %679 = vmatmul.mubr.f32.gmra.mxu0 %v678
        %v680 = vpop.f32.mrf.mxu0
        %v681 = vadd.f32 %v606, %v680
        %v682 = vpop.f32.mrf.mxu0
        %683 = vdwg.mxu0
        %684 = vst [vmem:[%s176] sm:$0xff] %v681
        %s685 = sand.u32 %s94, 1
        %s686 = scalar_lea.sflag [#allocation4], %s685
        %s687 = sand.u32 %s94, 1
        %s688 = smul.addr %s687, 8
        %s689 = scalar_lea.vmem [#allocation5], %s688
        // Predicated region
        $region37: #{tpu_custom_call.1} parent=31 // pred_check
          %p690 = pneg %p104
        $region38: #{tpu_custom_call.1} parent=31 // pred_check_branch
          %692 = sbr.rel (%p690) target = $region40
        $region39: #{tpu_custom_call.1} parent=31 // pred_region
          %s694 = ssub.s32 128, 128
          %695 = vsyncadd %s686, %s694
          %s696 = smul.addr %s18, 128
          %s697 = scalar_lea.hbm %s3, %s696
          %s699 = sshll.u32 %s689, 4
          %s700 = int_to_ptr.vmem [resolvable:$true] %s699
          %702 = dma.vmem_to_hbm [thread:$0]  %s700, 128, %s697, %s686
        $region40: #{tpu_custom_call.1} parent=31 // pred_fallthru
          _
      $region32: #{tpu_custom_call.1} parent=5 // pred_fallthru
        _
      %p703 = scmp.le.s32.totalorder 2, %s13
      // Predicated region
      $region41: #{tpu_custom_call.1} parent=5 // pred_check
        %p704 = pneg %p703
      $region42: #{tpu_custom_call.1} parent=5 // pred_check_branch
        %706 = sbr.rel (%p704) target = $region44
      $region43: #{tpu_custom_call.1} parent=5 // pred_region
        %s707 = ssub.s32 %s13, 2
        // Predicated region
        $region45: #{tpu_custom_call.1} parent=43 // pred_check
          %p708 = pneg %p110
        $region46: #{tpu_custom_call.1} parent=43 // pred_check_branch
          %710 = sbr.rel (%p708) target = $region48
        $region47: #{tpu_custom_call.1} parent=43 // pred_region
          %s711 = sand.u32 %s95, 1
          %s712 = scalar_lea.sflag [#allocation4], %s711
          %s713 = sand.u32 %s95, 1
          %s714 = smul.addr %s713, 8
          %s715 = scalar_lea.vmem [#allocation5], %s714
          %716 = dma.done %s712, 128
        $region48: #{tpu_custom_call.1} parent=43 // pred_fallthru
          _
      $region44: #{tpu_custom_call.1} parent=5 // pred_fallthru
        _
    $region6: #{tpu_custom_call.1} parent=1 // loop_footer
      %s17 = sadd.s32 1, %s13
    $region7: #{tpu_custom_call.1} parent=1 // loop_footer_branch
      %12 = sbr.rel target = $region3
    $region8: #{tpu_custom_call.1} parent=1 // loop_exit
      _
    %717 = vsyncpa [#allocation3], 1
    %s718 = scalar_lea.sflag [#allocation3], 1
    %719 = vsyncpa %s718, 1
    %720 = vsyncpa [#allocation4], 1
    %s721 = scalar_lea.sflag [#allocation4], 1
    %722 = vsyncpa %s721, 1

</llo_original>
